<compile_context>
chip_gen: v6e
topology: v6e:2x2x1
jax: 0.10.0
libtpu: 0.0.40
codegen_flags: <defaults>
</compile_context>

<pallas_src>
import functools

import jax
import jax.numpy as jnp
from jax.experimental import pallas as pl
from jax.experimental.pallas import tpu as pltpu

HIDDEN = 100   # logical hidden width of the torch model
HPAD = 128     # lane-aligned padded hidden width
KPAD = 8       # padded input-feature width for the first matmul
EPS = 1e-07


def _elu(v):
    # F.elu with alpha=1.0 (exp may overflow for large positive v but the
    # select discards it).
    return jnp.where(v > 0, v, jnp.exp(v) - 1.0)


def metagga_kernel(x_ref, w1_ref, w2_ref, b2_ref, w3_ref, b3_ref,
                   w4_ref, b4_ref, o_ref, *, mm_dtype, act_dtype):
    # x_ref: (7, TM) feature-major tile.
    x = x_ref[...].astype(jnp.float32)
    tm = x.shape[1]

    x0, x1, x2, x3, x4, x5, x6 = (x[i:i + 1, :] for i in range(7))

    rho = x0 + x1
    rho_eps = rho + EPS
    zeta = (x0 - x1) / rho_eps
    a = 1.0 + zeta
    b = 1.0 - zeta

    # All four cube roots via ONE stacked log + ONE stacked exp (EUP-dense).
    stk = jnp.concatenate([rho_eps, a, b, rho], axis=0)         # (4, TM)
    lg = jnp.log(stk)
    cbrt = jnp.exp(lg * (1.0 / 3.0))
    unif = cbrt[0:1, :]        # (rho + eps)^(1/3)
    a13 = cbrt[1:2, :]
    b13 = cbrt[2:3, :]
    eunif = cbrt[3:4, :]       # rho^(1/3), no eps (matches torch)
    log_rho_eps = lg[0:1, :]

    # Higher fractional powers via VPU multiplies.
    a43 = a * a13                                               # (1±z)^(4/3)
    b43 = b * b13
    t1 = (a43 + b43) * 0.5                                      # also spinscale
    ds = a43 * a13 + b43 * b13                                  # (1±z)^(5/3) sum

    unif2 = unif * unif
    unif4 = unif2 * unif2
    unif5 = unif4 * unif
    t2 = (jnp.sqrt(x2 + x4 + 2.0 * x3) + EPS) / unif4
    t3 = (x5 + x6 + EPS) / (unif5 * ds)

    log_t123 = jnp.log(jnp.concatenate([t1, t2, t3], axis=0))   # (3, TM)

    # logt rows: [log(rho+eps)/3, log t1, log t2, log t3, 1 (b1 fold), 0, 0, 0]
    logt = jnp.concatenate(
        [log_rho_eps * (1.0 / 3.0),
         log_t123,
         jnp.ones((1, tm), jnp.float32),
         jnp.zeros((KPAD - 5, tm), jnp.float32)], axis=0)       # (8, TM)

    mm = mm_dtype      # weights already stored in this dtype (host pre-cast)
    act = act_dtype    # ELU / activation elementwise dtype

    # fc1 (b1 folded into w1's padded input column 4 against the ones-row).
    h1 = jnp.dot(w1_ref[...], logt.astype(mm),
                 preferred_element_type=jnp.float32)
    g1 = _elu(h1.astype(act))                                   # (128, TM)
    h2 = jnp.dot(w2_ref[...], g1.astype(mm),
                 preferred_element_type=jnp.float32) + b2_ref[...]
    g2 = _elu(h2.astype(act))
    h3 = jnp.dot(w3_ref[...], g2.astype(mm),
                 preferred_element_type=jnp.float32) + b3_ref[...]
    g3 = _elu(h3.astype(act))
    h4_full = jnp.dot(w4_ref[...], g3.astype(mm),
                      preferred_element_type=jnp.float32)       # (8, TM)
    h4 = h4_full[0:1, :] + b4_ref[...]                          # (1, TM)

    # -(elu(h4) + 1) == -where(h4 > 0, h4 + 1, exp(h4))  (avoids -1...+1 cancel)
    g4 = -jnp.where(h4 > 0.0, h4 + 1.0, jnp.exp(h4)) * (eunif * t1)
    o_ref[...] = g4.astype(o_ref.dtype)


def _prepare_params(params, matmul_dtype):
    """(out,in)-major, zero-padded, matmul-dtype weights; f32 column biases.
    fc1's bias is folded into w1's spare padded input column 4 (logt row 4
    carries 1.0 inside the kernel)."""
    w1, b1, w2, b2, w3, b3, w4, b4 = params    # w: (in, out), b: (1, out)

    def wpad(w, out_pad, in_pad):
        wt = jnp.asarray(w, jnp.float32).T                     # (out, in)
        return jnp.pad(wt, ((0, out_pad - wt.shape[0]),
                            (0, in_pad - wt.shape[1])))

    def bcol(b, out_pad):
        bt = jnp.asarray(b, jnp.float32).reshape(-1, 1)        # (out, 1)
        return jnp.pad(bt, ((0, out_pad - bt.shape[0]), (0, 0)))

    w1p = wpad(w1, HPAD, KPAD)
    w1p = w1p.at[:, 4:5].set(bcol(b1, HPAD))                   # fold fc1 bias
    w2p = wpad(w2, HPAD, HPAD)
    w3p = wpad(w3, HPAD, HPAD)
    w4p = wpad(w4, KPAD, HPAD)

    cast = lambda w: w.astype(matmul_dtype)
    return (cast(w1p), cast(w2p), bcol(b2, HPAD),
            cast(w3p), bcol(b3, HPAD), cast(w4p),
            jnp.asarray(b4, jnp.float32).reshape(1, 1))


def metagga_forward(x, params, *, tm=1024, matmul_dtype=jnp.bfloat16,
                    activation_dtype=None, vmem_limit_bytes=None):
    """x: (N, 7) float32.  Returns (N, 1) float32.

    matmul_dtype: MXU operand dtype (bf16 default; f32 for exact checks).
    activation_dtype: ELU/elementwise dtype (defaults to matmul_dtype; pass
        jnp.float32 on v5e where VPU/EUP are f32-only).
    """
    n = x.shape[0]
    assert x.shape[1] == 7
    assert tm % 128 == 0, "row tile must be a multiple of 128 (lane width)"
    if activation_dtype is None:
        activation_dtype = matmul_dtype

    # Shrink the tile so the grid keeps >= 2 steps where possible (lets the
    # "parallel" axis split across both TensorCores on v7x), 128-lane aligned.
    tm_eff = min(tm, max(128, ((n + 255) // 256) * 128))
    n_pad = ((n + tm_eff - 1) // tm_eff) * tm_eff

    xt = jnp.asarray(x, jnp.float32).T                         # (7, N)
    if n_pad != n:
        xt = jnp.pad(xt, ((0, 0), (0, n_pad - n)), mode="edge")

    w1, w2, b2, w3, b3, w4, b4 = _prepare_params(params, matmul_dtype)

    const = lambda arr: pl.BlockSpec(arr.shape, lambda i: (0, 0))

    cp_kwargs = dict(dimension_semantics=("parallel",))
    if vmem_limit_bytes is None and tm_eff > 1024:
        # (128, TM) intermediates outgrow v5e's 16 MiB scoped default beyond
        # TM~1024; 48 MiB still leaves headroom on v7x's 64 MiB VMEM.
        vmem_limit_bytes = 48 * 1024 * 1024
    if vmem_limit_bytes is not None:
        cp_kwargs["vmem_limit_bytes"] = vmem_limit_bytes

    out = pl.pallas_call(
        functools.partial(metagga_kernel, mm_dtype=matmul_dtype,
                          act_dtype=activation_dtype),
        out_shape=jax.ShapeDtypeStruct((1, n_pad), jnp.float32),
        grid_spec=pltpu.PrefetchScalarGridSpec(
            num_scalar_prefetch=0,
            grid=(n_pad // tm_eff,),
            in_specs=[
                pl.BlockSpec((7, tm_eff), lambda i: (0, i)),   # x tile
                const(w1), const(w2), const(b2),
                const(w3), const(b3), const(w4), const(b4),
            ],
            out_specs=pl.BlockSpec((1, tm_eff), lambda i: (0, i)),  # lane-dense
        ),
        compiler_params=pltpu.CompilerParams(**cp_kwargs),
    )(xt, w1, w2, b2, w3, b3, w4, b4)

    return out[:, :n].T                                        # (N, 1)


def init_params(key):
    """Deterministic init mimicking nn.Linear (uniform ±1/sqrt(fan_in)).
    Weights stored as (in, out); biases as (1, out)."""
    def linear(k, fan_in, fan_out):
        kw, kb = jax.random.split(k)
        bound = 1.0 / jnp.sqrt(fan_in)
        w = jax.random.uniform(kw, (fan_in, fan_out), jnp.float32, -bound, bound)
        b = jax.random.uniform(kb, (1, fan_out), jnp.float32, -bound, bound)
        return w, b

    k1, k2, k3, k4 = jax.random.split(key, 4)
    w1, b1 = linear(k1, 4, HIDDEN)
    w2, b2 = linear(k2, HIDDEN, HIDDEN)
    w3, b3 = linear(k3, HIDDEN, HIDDEN)
    w4, b4 = linear(k4, HIDDEN, 1)
    return (w1, b1, w2, b2, w3, b3, w4, b4)


def reference_forward(x, params):
    """Pure-JAX reference of the PyTorch forward (spec formulation)."""
    w1, b1, w2, b2, w3, b3, w4, b4 = params
    hp = jax.lax.Precision.HIGHEST
    x0, x1, x2, x3, x4, x5, x6 = (x[:, i:i + 1] for i in range(7))
    rho = x0 + x1
    unif = (rho + EPS) ** (1.0 / 3.0)
    zeta = (x0 - x1) / (rho + EPS)
    t1 = ((1 + zeta) ** (4.0 / 3.0) + (1 - zeta) ** (4.0 / 3.0)) * 0.5
    t2 = ((x2 + x4 + 2 * x3) ** 0.5 + EPS) / unif ** 4
    ds = (1 + zeta) ** (5.0 / 3.0) + (1 - zeta) ** (5.0 / 3.0)
    t3 = (x5 + x6 + EPS) / (unif ** 5 * ds)
    logt = jnp.log(jnp.concatenate([unif, t1, t2, t3], axis=1))
    elu = lambda v: jnp.where(v > 0, v, jnp.exp(v) - 1.0)
    g1 = elu(jnp.dot(logt, w1, precision=hp) + b1)
    g2 = elu(jnp.dot(g1, w2, precision=hp) + b2)
    g3 = elu(jnp.dot(g2, w3, precision=hp) + b3)
    eunif = rho ** (1.0 / 3.0)
    h4 = jnp.dot(g3, w4, precision=hp) + b4
    return -(elu(h4) + 1.0) * eunif * t1


if __name__ == "__main__":
    key = jax.random.PRNGKey(0)
    kx, kp = jax.random.split(key)

    # Small batch, 7 input features; densities / gradient terms positive.
    N = 256
    x = jax.random.uniform(kx, (N, 7), jnp.float32, minval=0.1, maxval=1.0)
    params = init_params(kp)

    ref = reference_forward(x, params)

    # Tight check: pure f32 matmul + f32 activation path through the kernel.
    out_f32 = jax.block_until_ready(
        metagga_forward(x, params, matmul_dtype=jnp.float32,
                        activation_dtype=jnp.float32))
    assert out_f32.shape == (N, 1)
    err_f32 = jnp.max(jnp.abs(out_f32 - ref))
    assert jnp.allclose(out_f32, ref, rtol=5e-4, atol=1e-4), (
        f"f32-path mismatch: max abs err {err_f32}")

    # Fast path: bf16 MXU operands + bf16 activation math (default).
    out_bf16 = jax.block_until_ready(metagga_forward(x, params))
    assert out_bf16.shape == (N, 1)
    err_bf16 = jnp.max(jnp.abs(out_bf16 - ref))
    assert jnp.allclose(out_bf16, ref, rtol=1.5e-1, atol=3e-2), (
        f"bf16-path mismatch: max abs err {err_bf16}")

    print("KERNEL_OK")
</pallas_src>

<mosaic_0001>
module attributes {stable_mosaic.version = 11 : i64} {
  func.func @metagga_kernel(%arg0: i32, %arg1: memref<7x128xf32, #tpu.memory_space<vmem>>, %arg2: memref<128x8xf32, #tpu.memory_space<vmem>>, %arg3: memref<128x128xf32, #tpu.memory_space<vmem>>, %arg4: memref<128x1xf32, #tpu.memory_space<vmem>>, %arg5: memref<128x128xf32, #tpu.memory_space<vmem>>, %arg6: memref<128x1xf32, #tpu.memory_space<vmem>>, %arg7: memref<8x128xf32, #tpu.memory_space<vmem>>, %arg8: memref<1x1xf32, #tpu.memory_space<vmem>>, %arg9: memref<1x128xf32, #tpu.memory_space<vmem>>) attributes {dimension_semantics = [#tpu.dimension_semantics<parallel>], iteration_bounds = array<i64: 2>, scalar_prefetch = 0 : i64, scratch_operands = 0 : i64, tpu.core_type = #tpu.core_type<tc>, window_params = [{transform_indices = @transform_0, window_bounds = array<i64: 7, 128>}, {pipeline_mode = #tpu.pipeline_mode<synchronous>, transform_indices = @transform_1, window_bounds = array<i64: 128, 8>}, {pipeline_mode = #tpu.pipeline_mode<synchronous>, transform_indices = @transform_2, window_bounds = array<i64: 128, 128>}, {pipeline_mode = #tpu.pipeline_mode<synchronous>, transform_indices = @transform_3, window_bounds = array<i64: 128, 1>}, {pipeline_mode = #tpu.pipeline_mode<synchronous>, transform_indices = @transform_4, window_bounds = array<i64: 128, 128>}, {pipeline_mode = #tpu.pipeline_mode<synchronous>, transform_indices = @transform_5, window_bounds = array<i64: 128, 1>}, {pipeline_mode = #tpu.pipeline_mode<synchronous>, transform_indices = @transform_6, window_bounds = array<i64: 8, 128>}, {pipeline_mode = #tpu.pipeline_mode<synchronous>, transform_indices = @transform_7, window_bounds = array<i64: 1, 1>}, {transform_indices = @transform_8, window_bounds = array<i64: 1, 128>}]} {
    %c0 = arith.constant 0 : index
    %c0_0 = arith.constant 0 : index
    %0 = vector.load %arg1[%c0, %c0_0] : memref<7x128xf32, #tpu.memory_space<vmem>>, vector<7x128xf32>
    %1 = vector.extract_strided_slice %0 {offsets = [0, 0], sizes = [1, 128], strides = [1, 1]} : vector<7x128xf32> to vector<1x128xf32>
    %2 = vector.extract_strided_slice %0 {offsets = [1, 0], sizes = [1, 128], strides = [1, 1]} : vector<7x128xf32> to vector<1x128xf32>
    %3 = vector.extract_strided_slice %0 {offsets = [2, 0], sizes = [1, 128], strides = [1, 1]} : vector<7x128xf32> to vector<1x128xf32>
    %4 = vector.extract_strided_slice %0 {offsets = [3, 0], sizes = [1, 128], strides = [1, 1]} : vector<7x128xf32> to vector<1x128xf32>
    %5 = vector.extract_strided_slice %0 {offsets = [4, 0], sizes = [1, 128], strides = [1, 1]} : vector<7x128xf32> to vector<1x128xf32>
    %6 = vector.extract_strided_slice %0 {offsets = [5, 0], sizes = [1, 128], strides = [1, 1]} : vector<7x128xf32> to vector<1x128xf32>
    %7 = vector.extract_strided_slice %0 {offsets = [6, 0], sizes = [1, 128], strides = [1, 1]} : vector<7x128xf32> to vector<1x128xf32>
    %8 = arith.addf %1, %2 : vector<1x128xf32>
    %cst = arith.constant 1.000000e-07 : f32
    %9 = vector.broadcast %cst : f32 to vector<1x128xf32>
    %10 = arith.addf %8, %9 : vector<1x128xf32>
    %11 = arith.subf %1, %2 : vector<1x128xf32>
    %12 = arith.divf %11, %10 : vector<1x128xf32>
    %cst_1 = arith.constant 1.000000e+00 : f32
    %13 = vector.broadcast %cst_1 : f32 to vector<1x128xf32>
    %14 = arith.addf %13, %12 : vector<1x128xf32>
    %cst_2 = arith.constant 1.000000e+00 : f32
    %15 = vector.broadcast %cst_2 : f32 to vector<1x128xf32>
    %16 = arith.subf %15, %12 : vector<1x128xf32>
    %17 = tpu.concatenate %10, %14, %16, %8 in 0 : vector<1x128xf32>, vector<1x128xf32>, vector<1x128xf32>, vector<1x128xf32> -> vector<4x128xf32>
    %18 = math.log %17 : vector<4x128xf32>
    %cst_3 = arith.constant 0.333333343 : f32
    %19 = vector.broadcast %cst_3 : f32 to vector<4x128xf32>
    %20 = arith.mulf %18, %19 : vector<4x128xf32>
    %21 = math.exp %20 : vector<4x128xf32>
    %22 = vector.extract_strided_slice %21 {offsets = [0, 0], sizes = [1, 128], strides = [1, 1]} : vector<4x128xf32> to vector<1x128xf32>
    %23 = vector.extract_strided_slice %21 {offsets = [1, 0], sizes = [1, 128], strides = [1, 1]} : vector<4x128xf32> to vector<1x128xf32>
    %24 = vector.extract_strided_slice %21 {offsets = [2, 0], sizes = [1, 128], strides = [1, 1]} : vector<4x128xf32> to vector<1x128xf32>
    %25 = vector.extract_strided_slice %21 {offsets = [3, 0], sizes = [1, 128], strides = [1, 1]} : vector<4x128xf32> to vector<1x128xf32>
    %26 = vector.extract_strided_slice %18 {offsets = [0, 0], sizes = [1, 128], strides = [1, 1]} : vector<4x128xf32> to vector<1x128xf32>
    %27 = arith.mulf %14, %23 : vector<1x128xf32>
    %28 = arith.mulf %16, %24 : vector<1x128xf32>
    %29 = arith.addf %27, %28 : vector<1x128xf32>
    %cst_4 = arith.constant 5.000000e-01 : f32
    %30 = vector.broadcast %cst_4 : f32 to vector<1x128xf32>
    %31 = arith.mulf %29, %30 : vector<1x128xf32>
    %32 = arith.mulf %27, %23 : vector<1x128xf32>
    %33 = arith.mulf %28, %24 : vector<1x128xf32>
    %34 = arith.addf %32, %33 : vector<1x128xf32>
    %35 = arith.mulf %22, %22 : vector<1x128xf32>
    %36 = arith.mulf %35, %35 : vector<1x128xf32>
    %37 = arith.mulf %36, %22 : vector<1x128xf32>
    %38 = arith.addf %3, %5 : vector<1x128xf32>
    %cst_5 = arith.constant 2.000000e+00 : f32
    %39 = vector.broadcast %cst_5 : f32 to vector<1x128xf32>
    %40 = arith.mulf %39, %4 : vector<1x128xf32>
    %41 = arith.addf %38, %40 : vector<1x128xf32>
    %42 = math.sqrt %41 : vector<1x128xf32>
    %cst_6 = arith.constant 1.000000e-07 : f32
    %43 = vector.broadcast %cst_6 : f32 to vector<1x128xf32>
    %44 = arith.addf %42, %43 : vector<1x128xf32>
    %45 = arith.divf %44, %36 : vector<1x128xf32>
    %46 = arith.addf %6, %7 : vector<1x128xf32>
    %cst_7 = arith.constant 1.000000e-07 : f32
    %47 = vector.broadcast %cst_7 : f32 to vector<1x128xf32>
    %48 = arith.addf %46, %47 : vector<1x128xf32>
    %49 = arith.mulf %37, %34 : vector<1x128xf32>
    %50 = arith.divf %48, %49 : vector<1x128xf32>
    %51 = tpu.concatenate %31, %45, %50 in 0 : vector<1x128xf32>, vector<1x128xf32>, vector<1x128xf32> -> vector<3x128xf32>
    %52 = math.log %51 : vector<3x128xf32>
    %cst_8 = arith.constant 0.333333343 : f32
    %53 = vector.broadcast %cst_8 : f32 to vector<1x128xf32>
    %54 = arith.mulf %26, %53 : vector<1x128xf32>
    %cst_9 = arith.constant 1.000000e+00 : f32
    %55 = vector.broadcast %cst_9 : f32 to vector<1x128xf32>
    %cst_10 = arith.constant 0.000000e+00 : f32
    %56 = vector.broadcast %cst_10 : f32 to vector<3x128xf32>
    %57 = tpu.concatenate %54, %52, %55, %56 in 0 : vector<1x128xf32>, vector<3x128xf32>, vector<1x128xf32>, vector<3x128xf32> -> vector<8x128xf32>
    %c0_11 = arith.constant 0 : index
    %c0_12 = arith.constant 0 : index
    %58 = vector.load %arg2[%c0_11, %c0_12] : memref<128x8xf32, #tpu.memory_space<vmem>>, vector<128x8xf32>
    %cst_13 = arith.constant dense<0.000000e+00> : vector<128x128xf32>
    %59 = tpu.matmul %58, %57, %cst_13 {dimension_numbers = #tpu.dot_dimension_numbers<[1], [0], [0], [1], [0, 0, 1, 1], [], []>} : vector<128x8xf32>, vector<8x128xf32>, vector<128x128xf32> -> vector<128x128xf32>
    %cst_14 = arith.constant 0.000000e+00 : f32
    %60 = vector.broadcast %cst_14 : f32 to vector<128x128xf32>
    %61 = arith.cmpf ogt, %59, %60 : vector<128x128xf32>
    %62 = math.exp %59 : vector<128x128xf32>
    %cst_15 = arith.constant 1.000000e+00 : f32
    %63 = vector.broadcast %cst_15 : f32 to vector<128x128xf32>
    %64 = arith.subf %62, %63 : vector<128x128xf32>
    %65 = arith.select %61, %59, %64 : vector<128x128xi1>, vector<128x128xf32>
    %c0_16 = arith.constant 0 : index
    %c0_17 = arith.constant 0 : index
    %66 = vector.load %arg3[%c0_16, %c0_17] : memref<128x128xf32, #tpu.memory_space<vmem>>, vector<128x128xf32>
    %cst_18 = arith.constant dense<0.000000e+00> : vector<128x128xf32>
    %67 = tpu.matmul %66, %65, %cst_18 {dimension_numbers = #tpu.dot_dimension_numbers<[1], [0], [0], [1], [0, 0, 1, 1], [], []>} : vector<128x128xf32>, vector<128x128xf32>, vector<128x128xf32> -> vector<128x128xf32>
    %c0_19 = arith.constant 0 : index
    %c0_20 = arith.constant 0 : index
    %68 = vector.load %arg4[%c0_19, %c0_20] : memref<128x1xf32, #tpu.memory_space<vmem>>, vector<128x1xf32>
    %69 = vector.broadcast %68 : vector<128x1xf32> to vector<128x128xf32>
    %70 = arith.addf %67, %69 : vector<128x128xf32>
    %cst_21 = arith.constant 0.000000e+00 : f32
    %71 = vector.broadcast %cst_21 : f32 to vector<128x128xf32>
    %72 = arith.cmpf ogt, %70, %71 : vector<128x128xf32>
    %73 = math.exp %70 : vector<128x128xf32>
    %cst_22 = arith.constant 1.000000e+00 : f32
    %74 = vector.broadcast %cst_22 : f32 to vector<128x128xf32>
    %75 = arith.subf %73, %74 : vector<128x128xf32>
    %76 = arith.select %72, %70, %75 : vector<128x128xi1>, vector<128x128xf32>
    %c0_23 = arith.constant 0 : index
    %c0_24 = arith.constant 0 : index
    %77 = vector.load %arg5[%c0_23, %c0_24] : memref<128x128xf32, #tpu.memory_space<vmem>>, vector<128x128xf32>
    %cst_25 = arith.constant dense<0.000000e+00> : vector<128x128xf32>
    %78 = tpu.matmul %77, %76, %cst_25 {dimension_numbers = #tpu.dot_dimension_numbers<[1], [0], [0], [1], [0, 0, 1, 1], [], []>} : vector<128x128xf32>, vector<128x128xf32>, vector<128x128xf32> -> vector<128x128xf32>
    %c0_26 = arith.constant 0 : index
    %c0_27 = arith.constant 0 : index
    %79 = vector.load %arg6[%c0_26, %c0_27] : memref<128x1xf32, #tpu.memory_space<vmem>>, vector<128x1xf32>
    %80 = vector.broadcast %79 : vector<128x1xf32> to vector<128x128xf32>
    %81 = arith.addf %78, %80 : vector<128x128xf32>
    %cst_28 = arith.constant 0.000000e+00 : f32
    %82 = vector.broadcast %cst_28 : f32 to vector<128x128xf32>
    %83 = arith.cmpf ogt, %81, %82 : vector<128x128xf32>
    %84 = math.exp %81 : vector<128x128xf32>
    %cst_29 = arith.constant 1.000000e+00 : f32
    %85 = vector.broadcast %cst_29 : f32 to vector<128x128xf32>
    %86 = arith.subf %84, %85 : vector<128x128xf32>
    %87 = arith.select %83, %81, %86 : vector<128x128xi1>, vector<128x128xf32>
    %c0_30 = arith.constant 0 : index
    %c0_31 = arith.constant 0 : index
    %88 = vector.load %arg7[%c0_30, %c0_31] : memref<8x128xf32, #tpu.memory_space<vmem>>, vector<8x128xf32>
    %cst_32 = arith.constant dense<0.000000e+00> : vector<8x128xf32>
    %89 = tpu.matmul %88, %87, %cst_32 {dimension_numbers = #tpu.dot_dimension_numbers<[1], [0], [0], [1], [0, 0, 1, 1], [], []>} : vector<8x128xf32>, vector<128x128xf32>, vector<8x128xf32> -> vector<8x128xf32>
    %90 = vector.extract_strided_slice %89 {offsets = [0, 0], sizes = [1, 128], strides = [1, 1]} : vector<8x128xf32> to vector<1x128xf32>
    %c0_33 = arith.constant 0 : index
    %c0_34 = arith.constant 0 : index
    %91 = vector.load %arg8[%c0_33, %c0_34] : memref<1x1xf32, #tpu.memory_space<vmem>>, vector<1x1xf32>
    %92 = vector.broadcast %91 : vector<1x1xf32> to vector<1x128xf32>
    %93 = arith.addf %90, %92 : vector<1x128xf32>
    %cst_35 = arith.constant 0.000000e+00 : f32
    %94 = vector.broadcast %cst_35 : f32 to vector<1x128xf32>
    %95 = arith.cmpf ogt, %93, %94 : vector<1x128xf32>
    %cst_36 = arith.constant 1.000000e+00 : f32
    %96 = vector.broadcast %cst_36 : f32 to vector<1x128xf32>
    %97 = arith.addf %93, %96 : vector<1x128xf32>
    %98 = math.exp %93 : vector<1x128xf32>
    %99 = arith.select %95, %97, %98 : vector<1x128xi1>, vector<1x128xf32>
    %cst_37 = arith.constant 0.000000e+00 : f32
    %100 = vector.broadcast %cst_37 : f32 to vector<1x128xf32>
    %101 = arith.subf %100, %99 : vector<1x128xf32>
    %102 = arith.mulf %25, %31 : vector<1x128xf32>
    %103 = arith.mulf %101, %102 : vector<1x128xf32>
    %c0_38 = arith.constant 0 : index
    %c0_39 = arith.constant 0 : index
    %104 = vector.load %arg9[%c0_38, %c0_39] : memref<1x128xf32, #tpu.memory_space<vmem>>, vector<1x128xf32>
    tpu.vector_store %arg9[%c0_38, %c0_39], %103 {strides = array<i32>} : memref<1x128xf32, #tpu.memory_space<vmem>>, vector<1x128xf32>,
    return
  }
  func.func @transform_0(%arg0: i32) -> (i32, i32) {
    %c0_i32 = arith.constant 0 : i32
    %c0_i32_0 = arith.constant 0 : i32
    return %c0_i32, %arg0 : i32, i32
  }
  func.func @transform_1(%arg0: i32) -> (i32, i32) {
    %c0_i32 = arith.constant 0 : i32
    %c0_i32_0 = arith.constant 0 : i32
    %c0_i32_1 = arith.constant 0 : i32
    return %c0_i32, %c0_i32_0 : i32, i32
  }
  func.func @transform_2(%arg0: i32) -> (i32, i32) {
    %c0_i32 = arith.constant 0 : i32
    %c0_i32_0 = arith.constant 0 : i32
    %c0_i32_1 = arith.constant 0 : i32
    return %c0_i32, %c0_i32_0 : i32, i32
  }
  func.func @transform_3(%arg0: i32) -> (i32, i32) {
    %c0_i32 = arith.constant 0 : i32
    %c0_i32_0 = arith.constant 0 : i32
    %c0_i32_1 = arith.constant 0 : i32
    return %c0_i32, %c0_i32_0 : i32, i32
  }
  func.func @transform_4(%arg0: i32) -> (i32, i32) {
    %c0_i32 = arith.constant 0 : i32
    %c0_i32_0 = arith.constant 0 : i32
    %c0_i32_1 = arith.constant 0 : i32
    return %c0_i32, %c0_i32_0 : i32, i32
  }
  func.func @transform_5(%arg0: i32) -> (i32, i32) {
    %c0_i32 = arith.constant 0 : i32
    %c0_i32_0 = arith.constant 0 : i32
    %c0_i32_1 = arith.constant 0 : i32
    return %c0_i32, %c0_i32_0 : i32, i32
  }
  func.func @transform_6(%arg0: i32) -> (i32, i32) {
    %c0_i32 = arith.constant 0 : i32
    %c0_i32_0 = arith.constant 0 : i32
    %c0_i32_1 = arith.constant 0 : i32
    return %c0_i32, %c0_i32_0 : i32, i32
  }
  func.func @transform_7(%arg0: i32) -> (i32, i32) {
    %c0_i32 = arith.constant 0 : i32
    %c0_i32_0 = arith.constant 0 : i32
    %c0_i32_1 = arith.constant 0 : i32
    return %c0_i32, %c0_i32_0 : i32, i32
  }
  func.func @transform_8(%arg0: i32) -> (i32, i32) {
    %c0_i32 = arith.constant 0 : i32
    %c0_i32_0 = arith.constant 0 : i32
    return %c0_i32, %arg0 : i32, i32
  }
}

</mosaic_0001>

<llo_original>
// kernel: tpu_custom_call.1
$region0: #{tpu_custom_call.1}
  #allocation0 [shape = 'u32[]', space=smem, size = 0x4, offset = 0x4, fixed_abs, tag = 'smem constant byte address 0x4 - core index']
  #allocation1 [shape = 'u32[144,128]{1,0:T(1,128)}', space=vmem, size = 0x12000, scoped, tag = 'internal scratch']
  #allocation2 [shape = 'f32[1,1]{1,0:T(1,128)S(1)}', space=vmem, size = 0x200, scoped, tag = 'scoped memory for tpu_custom_call.1']
  %s0 = inlined_call_operand.vmem [shape: f32[7,256], index: 0, kind: input, shape index: {}]
  %s1 = inlined_call_operand.vmem [shape: f32[128,8], index: 1, kind: input, shape index: {}]
  %s2 = inlined_call_operand.vmem [shape: f32[128,128], index: 2, kind: input, shape index: {}]
  %s3 = inlined_call_operand.vmem [shape: f32[128,1], index: 3, kind: input, shape index: {}]
  %s4 = inlined_call_operand.vmem [shape: f32[128,128], index: 4, kind: input, shape index: {}]
  %s5 = inlined_call_operand.vmem [shape: f32[128,1], index: 5, kind: input, shape index: {}]
  %s6 = inlined_call_operand.vmem [shape: f32[8,128], index: 6, kind: input, shape index: {}]
  %s7 = inlined_call_operand.<no memory space> [shape: f32[1,1], index: 7, kind: input, shape index: {}]
  %s8 = inlined_call_operand.hbm [shape: f32[1,256], index: 8, kind: output, shape index: {}]
  %s9 = sld [smem:[#allocation0]]
  $region65: #{tpu_custom_call.1} parent=0
    _
  %s11 = ssub.s32 1, %s9
  %s12 = scalar_select 0, %s11, %s9
  %v13 = vstv %s7
  %14 = vst [vmem:[#allocation2] sm:$0x1] %v13
  $region1: #{tpu_custom_call.1} parent=0
    #allocation3 [shape = 'u8[1024]{0}', space=vmem, size = 0x400, scoped, tag = 'output window, operand 0']
    #allocation4 [shape = 's32[2]{0}', space=sflag, size = 0x8, scoped, tag = 'scoped memory for tpu_custom_call.1']
    %15 = vsyncpa [#allocation4], 0
    %s16 = scalar_lea.sflag [#allocation4], 1
    %17 = vsyncpa %s16, 0
    loop: start=0, step=1, limit=4
    $region2: #{tpu_custom_call.1} parent=1 // loop_pre_header
      _
    $region3: #{tpu_custom_call.1} parent=1 // loop_header
      %s19 = sphi 0, %s23
      %p20 = scmp.ge.s32.totalorder %s19, 4
      %s29 = sphi 0, %s31
      %s32 = sphi 0, %s29
      %s33 = sphi 0, %s32
      %s49 = sphi 0, %s33
      %s53 = sphi 0, %s53
      %s55 = sphi 0, %s53
      %s56 = sphi 0, %s55
      %s70 = sphi 0, %s56
      %s74 = sphi 0, %s74
      %s76 = sphi 0, %s74
      %s77 = sphi 0, %s76
      %s91 = sphi 0, %s77
      %s95 = sphi 0, %s95
      %s97 = sphi 0, %s95
      %s98 = sphi 0, %s97
      %s112 = sphi 0, %s98
      %s116 = sphi 0, %s116
      %s118 = sphi 0, %s116
      %s119 = sphi 0, %s118
      %s133 = sphi 0, %s119
      %s137 = sphi 0, %s137
      %s139 = sphi 0, %s137
      %s140 = sphi 0, %s139
      %s154 = sphi 0, %s140
      %s158 = sphi 0, %s158
      %s160 = sphi 0, %s158
      %s161 = sphi 0, %s160
      %s175 = sphi 0, %s161
      %s179 = sphi 0, %s179
      %s181 = sphi 0, %s179
      %s182 = sphi 0, %s181
      %s196 = sphi 0, %s182
      %s202 = sphi 0, %s204
      %s205 = sphi 0, %s202
      %s206 = sphi 0, %s205
      %s222 = sphi 0, %s206
    $region4: #{tpu_custom_call.1} parent=1 // loop_header_branch
      %22 = sbr.rel (%p20) target = $region8
    $region5: #{tpu_custom_call.1} parent=1 // loop_body
      %s24 = ssub.s32 %s19, 1
      %s25 = ssub.s32 %s19, 2
      %s26 = sadd.s32 %s19, 1
      %s27 = ssub.s32 %s19, %s26
      %p28 = scmp.eq.s32.totalorder %s27, 0
      %s30 = sadd.s32 %s29, 1
      %s31 = scalar_select %p28, %s29, %s30
      %p34 = pneg %p28
      %p35 = scmp.eq.s32.totalorder %s19, 1
      %p36 = por %p34, %p35
      %p37 = scmp.ne.s32.totalorder %s29, %s32
      %p38 = scmp.eq.s32.totalorder %s19, 0
      %p39 = por %p37, %p38
      %p40 = scmp.ne.s32.totalorder %s29, %s32
      %p41 = scmp.eq.s32.totalorder %s24, 1
      %p42 = por %p40, %p41
      %p43 = scmp.ne.s32.totalorder %s32, %s33
      %p44 = scmp.eq.s32.totalorder %s24, 0
      %p45 = por %p43, %p44
      %p46 = scmp.ne.s32.totalorder %s32, %s33
      %p47 = scmp.eq.s32.totalorder %s25, 1
      %p48 = por %p46, %p47
      %p50 = scmp.ne.s32.totalorder %s33, %s49
      %p51 = scmp.eq.s32.totalorder %s25, 0
      %p52 = por %p50, %p51
      %s54 = sadd.s32 %s53, 1
      %p57 = scmp.eq.s32.totalorder %s19, 1
      %p58 = scmp.ne.s32.totalorder %s53, %s55
      %p59 = scmp.eq.s32.totalorder %s19, 0
      %p60 = por %p58, %p59
      %p61 = scmp.ne.s32.totalorder %s53, %s55
      %p62 = scmp.eq.s32.totalorder %s24, 1
      %p63 = por %p61, %p62
      %p64 = scmp.ne.s32.totalorder %s55, %s56
      %p65 = scmp.eq.s32.totalorder %s24, 0
      %p66 = por %p64, %p65
      %p67 = scmp.ne.s32.totalorder %s55, %s56
      %p68 = scmp.eq.s32.totalorder %s25, 1
      %p69 = por %p67, %p68
      %p71 = scmp.ne.s32.totalorder %s56, %s70
      %p72 = scmp.eq.s32.totalorder %s25, 0
      %p73 = por %p71, %p72
      %s75 = sadd.s32 %s74, 1
      %p78 = scmp.eq.s32.totalorder %s19, 1
      %p79 = scmp.ne.s32.totalorder %s74, %s76
      %p80 = scmp.eq.s32.totalorder %s19, 0
      %p81 = por %p79, %p80
      %p82 = scmp.ne.s32.totalorder %s74, %s76
      %p83 = scmp.eq.s32.totalorder %s24, 1
      %p84 = por %p82, %p83
      %p85 = scmp.ne.s32.totalorder %s76, %s77
      %p86 = scmp.eq.s32.totalorder %s24, 0
      %p87 = por %p85, %p86
      %p88 = scmp.ne.s32.totalorder %s76, %s77
      %p89 = scmp.eq.s32.totalorder %s25, 1
      %p90 = por %p88, %p89
      %p92 = scmp.ne.s32.totalorder %s77, %s91
      %p93 = scmp.eq.s32.totalorder %s25, 0
      %p94 = por %p92, %p93
      %s96 = sadd.s32 %s95, 1
      %p99 = scmp.eq.s32.totalorder %s19, 1
      %p100 = scmp.ne.s32.totalorder %s95, %s97
      %p101 = scmp.eq.s32.totalorder %s19, 0
      %p102 = por %p100, %p101
      %p103 = scmp.ne.s32.totalorder %s95, %s97
      %p104 = scmp.eq.s32.totalorder %s24, 1
      %p105 = por %p103, %p104
      %p106 = scmp.ne.s32.totalorder %s97, %s98
      %p107 = scmp.eq.s32.totalorder %s24, 0
      %p108 = por %p106, %p107
      %p109 = scmp.ne.s32.totalorder %s97, %s98
      %p110 = scmp.eq.s32.totalorder %s25, 1
      %p111 = por %p109, %p110
      %p113 = scmp.ne.s32.totalorder %s98, %s112
      %p114 = scmp.eq.s32.totalorder %s25, 0
      %p115 = por %p113, %p114
      %s117 = sadd.s32 %s116, 1
      %p120 = scmp.eq.s32.totalorder %s19, 1
      %p121 = scmp.ne.s32.totalorder %s116, %s118
      %p122 = scmp.eq.s32.totalorder %s19, 0
      %p123 = por %p121, %p122
      %p124 = scmp.ne.s32.totalorder %s116, %s118
      %p125 = scmp.eq.s32.totalorder %s24, 1
      %p126 = por %p124, %p125
      %p127 = scmp.ne.s32.totalorder %s118, %s119
      %p128 = scmp.eq.s32.totalorder %s24, 0
      %p129 = por %p127, %p128
      %p130 = scmp.ne.s32.totalorder %s118, %s119
      %p131 = scmp.eq.s32.totalorder %s25, 1
      %p132 = por %p130, %p131
      %p134 = scmp.ne.s32.totalorder %s119, %s133
      %p135 = scmp.eq.s32.totalorder %s25, 0
      %p136 = por %p134, %p135
      %s138 = sadd.s32 %s137, 1
      %p141 = scmp.eq.s32.totalorder %s19, 1
      %p142 = scmp.ne.s32.totalorder %s137, %s139
      %p143 = scmp.eq.s32.totalorder %s19, 0
      %p144 = por %p142, %p143
      %p145 = scmp.ne.s32.totalorder %s137, %s139
      %p146 = scmp.eq.s32.totalorder %s24, 1
      %p147 = por %p145, %p146
      %p148 = scmp.ne.s32.totalorder %s139, %s140
      %p149 = scmp.eq.s32.totalorder %s24, 0
      %p150 = por %p148, %p149
      %p151 = scmp.ne.s32.totalorder %s139, %s140
      %p152 = scmp.eq.s32.totalorder %s25, 1
      %p153 = por %p151, %p152
      %p155 = scmp.ne.s32.totalorder %s140, %s154
      %p156 = scmp.eq.s32.totalorder %s25, 0
      %p157 = por %p155, %p156
      %s159 = sadd.s32 %s158, 1
      %p162 = scmp.eq.s32.totalorder %s19, 1
      %p163 = scmp.ne.s32.totalorder %s158, %s160
      %p164 = scmp.eq.s32.totalorder %s19, 0
      %p165 = por %p163, %p164
      %p166 = scmp.ne.s32.totalorder %s158, %s160
      %p167 = scmp.eq.s32.totalorder %s24, 1
      %p168 = por %p166, %p167
      %p169 = scmp.ne.s32.totalorder %s160, %s161
      %p170 = scmp.eq.s32.totalorder %s24, 0
      %p171 = por %p169, %p170
      %p172 = scmp.ne.s32.totalorder %s160, %s161
      %p173 = scmp.eq.s32.totalorder %s25, 1
      %p174 = por %p172, %p173
      %p176 = scmp.ne.s32.totalorder %s161, %s175
      %p177 = scmp.eq.s32.totalorder %s25, 0
      %p178 = por %p176, %p177
      %s180 = sadd.s32 %s179, 1
      %p183 = scmp.eq.s32.totalorder %s19, 1
      %p184 = scmp.ne.s32.totalorder %s179, %s181
      %p185 = scmp.eq.s32.totalorder %s19, 0
      %p186 = por %p184, %p185
      %p187 = scmp.ne.s32.totalorder %s179, %s181
      %p188 = scmp.eq.s32.totalorder %s24, 1
      %p189 = por %p187, %p188
      %p190 = scmp.ne.s32.totalorder %s181, %s182
      %p191 = scmp.eq.s32.totalorder %s24, 0
      %p192 = por %p190, %p191
      %p193 = scmp.ne.s32.totalorder %s181, %s182
      %p194 = scmp.eq.s32.totalorder %s25, 1
      %p195 = por %p193, %p194
      %p197 = scmp.ne.s32.totalorder %s182, %s196
      %p198 = scmp.eq.s32.totalorder %s25, 0
      %p199 = por %p197, %p198
      %s200 = ssub.s32 %s19, %s26
      %p201 = scmp.eq.s32.totalorder %s200, 0
      %s203 = sadd.s32 %s202, 1
      %s204 = scalar_select %p201, %s202, %s203
      %p207 = pneg %p201
      %p208 = scmp.eq.s32.totalorder %s19, 1
      %p209 = por %p207, %p208
      %p210 = scmp.ne.s32.totalorder %s202, %s205
      %p211 = scmp.eq.s32.totalorder %s19, 0
      %p212 = por %p210, %p211
      %p213 = scmp.ne.s32.totalorder %s202, %s205
      %p214 = scmp.eq.s32.totalorder %s24, 1
      %p215 = por %p213, %p214
      %p216 = scmp.ne.s32.totalorder %s205, %s206
      %p217 = scmp.eq.s32.totalorder %s24, 0
      %p218 = por %p216, %p217
      %p219 = scmp.ne.s32.totalorder %s205, %s206
      %p220 = scmp.eq.s32.totalorder %s25, 1
      %p221 = por %p219, %p220
      %p223 = scmp.ne.s32.totalorder %s206, %s222
      %p224 = scmp.eq.s32.totalorder %s25, 0
      %p225 = por %p223, %p224
      %p226 = scmp.le.s32.totalorder 1, %s19
      %p227 = scmp.lt.s32.totalorder %s19, 3
      %p228 = pnand %p226, %p227
      %p229 = pneg %p228
      // Predicated region
      $region9: #{tpu_custom_call.1} parent=5 // pred_check
        _
      $region10: #{tpu_custom_call.1} parent=5 // pred_check_branch
        %231 = sbr.rel (%p228) target = $region12
      $region11: #{tpu_custom_call.1} parent=5 // pred_region
        %s232 = ssub.s32 %s19, 1
        // Predicated region
        $region13: #{tpu_custom_call.1} parent=11 // pred_check
          %p233 = pneg %p66
        $region14: #{tpu_custom_call.1} parent=11 // pred_check_branch
          %235 = sbr.rel (%p233) target = $region16
        $region15: #{tpu_custom_call.1} parent=11 // pred_region
          _
        $region16: #{tpu_custom_call.1} parent=11 // pred_fallthru
          _
        // Predicated region
        $region17: #{tpu_custom_call.1} parent=11 // pred_check
          %p236 = pneg %p87
        $region18: #{tpu_custom_call.1} parent=11 // pred_check_branch
          %238 = sbr.rel (%p236) target = $region20
        $region19: #{tpu_custom_call.1} parent=11 // pred_region
          _
        $region20: #{tpu_custom_call.1} parent=11 // pred_fallthru
          _
        // Predicated region
        $region21: #{tpu_custom_call.1} parent=11 // pred_check
          %p239 = pneg %p108
        $region22: #{tpu_custom_call.1} parent=11 // pred_check_branch
          %241 = sbr.rel (%p239) target = $region24
        $region23: #{tpu_custom_call.1} parent=11 // pred_region
          _
        $region24: #{tpu_custom_call.1} parent=11 // pred_fallthru
          _
        // Predicated region
        $region25: #{tpu_custom_call.1} parent=11 // pred_check
          %p242 = pneg %p129
        $region26: #{tpu_custom_call.1} parent=11 // pred_check_branch
          %244 = sbr.rel (%p242) target = $region28
        $region27: #{tpu_custom_call.1} parent=11 // pred_region
          _
        $region28: #{tpu_custom_call.1} parent=11 // pred_fallthru
          _
        // Predicated region
        $region29: #{tpu_custom_call.1} parent=11 // pred_check
          %p245 = pneg %p150
        $region30: #{tpu_custom_call.1} parent=11 // pred_check_branch
          %247 = sbr.rel (%p245) target = $region32
        $region31: #{tpu_custom_call.1} parent=11 // pred_region
          _
        $region32: #{tpu_custom_call.1} parent=11 // pred_fallthru
          _
        // Predicated region
        $region33: #{tpu_custom_call.1} parent=11 // pred_check
          %p248 = pneg %p171
        $region34: #{tpu_custom_call.1} parent=11 // pred_check_branch
          %250 = sbr.rel (%p248) target = $region36
        $region35: #{tpu_custom_call.1} parent=11 // pred_region
          _
        $region36: #{tpu_custom_call.1} parent=11 // pred_fallthru
          _
        // Predicated region
        $region37: #{tpu_custom_call.1} parent=11 // pred_check
          %p251 = pneg %p192
        $region38: #{tpu_custom_call.1} parent=11 // pred_check_branch
          %253 = sbr.rel (%p251) target = $region40
        $region39: #{tpu_custom_call.1} parent=11 // pred_region
          _
        $region40: #{tpu_custom_call.1} parent=11 // pred_fallthru
          _
      $region12: #{tpu_custom_call.1} parent=5 // pred_fallthru
        _
      %p254 = scmp.lt.s32.totalorder %s19, 2
      // Predicated region
      $region41: #{tpu_custom_call.1} parent=5 // pred_check
        %p255 = pneg %p254
      $region42: #{tpu_custom_call.1} parent=5 // pred_check_branch
        %257 = sbr.rel (%p255) target = $region44
      $region43: #{tpu_custom_call.1} parent=5 // pred_region
        // Predicated region
        $region45: #{tpu_custom_call.1} parent=43 // pred_check
          %p258 = pneg %p39
        $region46: #{tpu_custom_call.1} parent=43 // pred_check_branch
          %260 = sbr.rel (%p258) target = $region48
        $region47: #{tpu_custom_call.1} parent=43 // pred_region
          %p261 = scmp.lt.s32.totalorder %s19, 1
          %s262 = scalar_select %p261, %s19, 1
          %s263 = smul.addr %s262, 8
          %s264 = scalar_lea.vmem %s0, %s263
        $region48: #{tpu_custom_call.1} parent=43 // pred_fallthru
          _
      $region44: #{tpu_custom_call.1} parent=5 // pred_fallthru
        _
      %p265 = scmp.le.s32.totalorder 1, %s19
      %p266 = scmp.lt.s32.totalorder %s19, 3
      %p267 = pnand %p265, %p266
      %p268 = pneg %p267
      // Predicated region
      $region49: #{tpu_custom_call.1} parent=5 // pred_check
        _
      $region50: #{tpu_custom_call.1} parent=5 // pred_check_branch
        %270 = sbr.rel (%p267) target = $region52
      $region51: #{tpu_custom_call.1} parent=5 // pred_region
        %s271 = ssub.s32 %s19, 1
        %p272 = scmp.lt.s32.totalorder %s24, 1
        %s273 = scalar_select %p272, %s24, 1
        %s274 = smul.addr %s273, 8
        %s275 = scalar_lea.vmem %s0, %s274
        %p276 = pneg %p45
        %p277 = pneg %p42
        %p278 = pneg %p66
        %p279 = pneg %p63
        %p280 = pneg %p87
        %p281 = pneg %p84
        %p282 = pneg %p108
        %p283 = pneg %p105
        %p284 = pneg %p129
        %p285 = pneg %p126
        %p286 = pneg %p150
        %p287 = pneg %p147
        %p288 = pneg %p171
        %p289 = pneg %p168
        %p290 = pneg %p192
        %p291 = pneg %p189
        %p292 = pneg %p218
        %p293 = pneg %p215
        %s294 = sand.u32 %s205, 1
        %s295 = scalar_lea.sflag [#allocation4], %s294
        %s296 = sand.u32 %s205, 1
        %s297 = scalar_lea.vmem [#allocation3], %s296
        %p298 = scmp.lt.s32.totalorder %s24, 1
        %s299 = scalar_select %p298, %s24, 1
        %s300 = smul.addr %s299, 8
        %s301 = scalar_lea.vmem %s0, %s300
        %v302 = vld [vmem:[%s301] sm:$0x7f]
        %v304 = vrot.slane %v302, 1
        %v306 = vadd.f32 %v302, %v304
        %v307 = vadd.f32 %v306, 1e-07
        %v308 = vsub.f32 %v302, %v304
        %v309 = vrcp.pop %v307
        %v310 = vmul.f32 %v308, %v309
        %v311 = vadd.f32 %v310, 1.0
        %v312 = vsub.f32 1.0, %v310
        %v314 = vrot.slane %v311, 7
        %v317 = vrot.slane %v312, 6
        %v320 = vrot.slane %v306, 5
        %vm322 = vcmask 1040384
        %v323 = vsel %vm322, %v307, %v314
        %vm324 = vcmask 1041408
        %v325 = vsel %vm324, %v323, %v317
        %vm326 = vcmask 1042432
        %v327 = vsel %vm326, %v325, %v320
        %v328 = vlog2.pop %v327
        %v329 = vmul.f32 %v328, 0.6931472
        %v330 = vmul.f32 %v329, 0.33333334
        %v331 = vmul.f32 %v330, 1.442695
        %v332 = vpow.pop %v331
        %v334 = vrot.slane %v332, 1
        %v336 = vmul.f32 %v311, %v334
        %v337 = vrot.slane %v332, 2
        %v339 = vmul.f32 %v312, %v337
        %v340 = vadd.f32 %v336, %v339
        %v341 = vmul.f32 %v340, 0.5
        %v342 = vmul.f32 %v336, %v334
        %v343 = vmul.f32 %v339, %v337
        %v344 = vadd.f32 %v342, %v343
        %v345 = vmul.f32 %v332, %v332
        %v346 = vmul.f32 %v345, %v345
        %v347 = vmul.f32 %v346, %v332
        %v348 = vrot.slane %v302, 2
        %v350 = vadd.f32 %v302, %v348
        %v351 = vmul.f32 %v302, 2.0
        %v353 = vrot.slane %v351, 1
        %v355 = vadd.f32 %v350, %v353
        %v356 = vrsqrt.pop %v355
        %v357 = vmul.f32 %v355, %v356
        %vm358 = vcmp.eq.f32.partialorder %v355, inf
        %v359 = vsel %vm358, %v355, %v357
        %vm360 = vcmp.eq.f32.partialorder %v355, 0.0
        %v361 = vand.u32 %v355, 2147483648
        %v362 = vsel %vm360, %v361, %v359
        %v363 = vadd.f32 %v362, 1e-07
        %v365 = vrot.slane %v346, 6
        %v367 = vrcp.pop %v365
        %v368 = vmul.f32 %v363, %v367
        %v369 = vmul.f32 %v347, %v344
        %v371 = vrot.slane %v369, 3
        %v373 = vrcp.pop %v371
        %v374 = vmul.f32 %v307, %v373
        %v376 = vrot.slane %v368, 1
        %v379 = vrot.slane %v374, 3
        %v381 = vsel %vm322, %v341, %v376
        %v382 = vsel %vm324, %v381, %v379
        %v383 = vlog2.pop %v382
        %v384 = vmul.f32 %v383, 0.6931472
        %v386 = vrot.slane %v384, 7
        %v388 = vsel %vm322, %v330, %v386
        %vm389 = vcmask 1043456
        %v390 = vsel %vm389, %v388, 1.0
        %vm391 = vcmask 1044480
        %v392 = vsel %vm391, %v390, 0.0
        %v393 = vld [vmem:[%s1] sm:$0xff]
        %v394 = vld [vmem:[%s1 + $0x8] sm:$0xff]
        %v395 = vld [vmem:[%s1 + $0x10] sm:$0xff]
        %v396 = vld [vmem:[%s1 + $0x18] sm:$0xff]
        %v397 = vld [vmem:[%s1 + $0x20] sm:$0xff]
        %v398 = vld [vmem:[%s1 + $0x28] sm:$0xff]
        %v399 = vld [vmem:[%s1 + $0x30] sm:$0xff]
        %v400 = vld [vmem:[%s1 + $0x38] sm:$0xff]
        %v401 = vld [vmem:[%s1 + $0x40] sm:$0xff]
        %v402 = vld [vmem:[%s1 + $0x48] sm:$0xff]
        %v403 = vld [vmem:[%s1 + $0x50] sm:$0xff]
        %v404 = vld [vmem:[%s1 + $0x58] sm:$0xff]
        %v405 = vld [vmem:[%s1 + $0x60] sm:$0xff]
        %v406 = vld [vmem:[%s1 + $0x68] sm:$0xff]
        %v407 = vld [vmem:[%s1 + $0x70] sm:$0xff]
        %v408 = vld [vmem:[%s1 + $0x78] sm:$0xff]
        %vm409 = vcmask 64512
        %v411 = vsel %vm409, %v393, 0
        %v414 = vsel %vm409, %v394, 0
        %v417 = vsel %vm409, %v395, 0
        %v420 = vsel %vm409, %v396, 0
        %v423 = vsel %vm409, %v397, 0
        %v426 = vsel %vm409, %v398, 0
        %v429 = vsel %vm409, %v399, 0
        %v432 = vsel %vm409, %v400, 0
        %v435 = vsel %vm409, %v401, 0
        %v438 = vsel %vm409, %v402, 0
        %v441 = vsel %vm409, %v403, 0
        %v444 = vsel %vm409, %v404, 0
        %v447 = vsel %vm409, %v405, 0
        %v450 = vsel %vm409, %v406, 0
        %v453 = vsel %vm409, %v407, 0
        %v456 = vsel %vm409, %v408, 0
        %458 = vmatprep.subr.mxu0 0.0
        %459 = vmatpush1.msra.mxu0 0.0
        %460 = vmatprep.subr.mxu0 0.0
        %461 = vmatpush1.msra.mxu0 0.0
        %462 = vmatprep.subr.mxu0 0.0
        %463 = vmatpush1.msra.mxu0 0.0
        %464 = vmatprep.subr.mxu0 0.0
        %465 = vmatpush1.msra.mxu0 0.0
        %466 = vmatprep.subr.mxu0 0.0
        %467 = vmatpush1.msra.mxu0 0.0
        %468 = vmatprep.subr.mxu0 0.0
        %469 = vmatpush1.msra.mxu0 0.0
        %470 = vmatprep.subr.mxu0 0.0
        %471 = vmatpush1.msra.mxu0 0.0
        %472 = vmatprep.subr.mxu0 0.0
        %473 = vmatpush1.msra.mxu0 0.0
        %474 = vmatprep.subr.mxu0 0.0
        %475 = vmatpush1.msra.mxu0 0.0
        %476 = vmatprep.subr.mxu0 0.0
        %477 = vmatpush1.msra.mxu0 0.0
        %478 = vmatprep.subr.mxu0 0.0
        %479 = vmatpush1.msra.mxu0 0.0
        %480 = vmatprep.subr.mxu0 0.0
        %481 = vmatpush1.msra.mxu0 0.0
        %482 = vmatprep.subr.mxu0 0.0
        %483 = vmatpush1.msra.mxu0 0.0
        %484 = vmatprep.subr.mxu0 0.0
        %485 = vmatpush1.msra.mxu0 0.0
        %486 = vmatprep.subr.mxu0 0.0
        %487 = vmatpush1.msra.mxu0 0.0
        %488 = vmatprep.subr.mxu0 0.0
        %489 = vmatpush1.msra.mxu0 %v392
        %490 = vmatprep.subr.mxu0 0.0
        %491 = vmatpush2.msra.mxu0 0.0
        %492 = vmatprep.subr.mxu0 0.0
        %493 = vmatpush2.msra.mxu0 0.0
        %494 = vmatprep.subr.mxu0 0.0
        %495 = vmatpush2.msra.mxu0 0.0
        %496 = vmatprep.subr.mxu0 0.0
        %497 = vmatpush2.msra.mxu0 0.0
        %498 = vmatprep.subr.mxu0 0.0
        %499 = vmatpush2.msra.mxu0 0.0
        %500 = vmatprep.subr.mxu0 0.0
        %501 = vmatpush2.msra.mxu0 0.0
        %502 = vmatprep.subr.mxu0 0.0
        %503 = vmatpush2.msra.mxu0 0.0
        %504 = vmatprep.subr.mxu0 0.0
        %505 = vmatpush2.msra.mxu0 0.0
        %506 = vmatprep.subr.mxu0 0.0
        %507 = vmatpush2.msra.mxu0 0.0
        %508 = vmatprep.subr.mxu0 0.0
        %509 = vmatpush2.msra.mxu0 0.0
        %510 = vmatprep.subr.mxu0 0.0
        %511 = vmatpush2.msra.mxu0 0.0
        %512 = vmatprep.subr.mxu0 0.0
        %513 = vmatpush2.msra.mxu0 0.0
        %514 = vmatprep.subr.mxu0 0.0
        %515 = vmatpush2.msra.mxu0 0.0
        %516 = vmatprep.subr.mxu0 0.0
        %517 = vmatpush2.msra.mxu0 0.0
        %518 = vmatprep.subr.mxu0 0.0
        %519 = vmatpush2.msra.mxu0 0.0
        %520 = vmatprep.subr.mxu0 0.0
        %521 = vmatpush2.msra.mxu0 0.0
        %522 = vmatprep.mubr.f32.mxu0 0.0
        %523 = vmatmul.mubr.f32.gmra.mxu0 %v411
        %v524 = vpop.f32.mrf.mxu0
        %v525 = vadd.f32 0.0, %v524
        %v526 = vpop.f32.mrf.mxu0
        %527 = vmatprep.mubr.f32.mxu0 0.0
        %528 = vmatmul.mubr.f32.gmra.mxu0 %v414
        %v529 = vpop.f32.mrf.mxu0
        %v530 = vadd.f32 0.0, %v529
        %v531 = vpop.f32.mrf.mxu0
        %532 = vmatprep.mubr.f32.mxu0 0.0
        %533 = vmatmul.mubr.f32.gmra.mxu0 %v417
        %v534 = vpop.f32.mrf.mxu0
        %v535 = vadd.f32 0.0, %v534
        %v536 = vpop.f32.mrf.mxu0
        %537 = vmatprep.mubr.f32.mxu0 0.0
        %538 = vmatmul.mubr.f32.gmra.mxu0 %v420
        %v539 = vpop.f32.mrf.mxu0
        %v540 = vadd.f32 0.0, %v539
        %v541 = vpop.f32.mrf.mxu0
        %542 = vmatprep.mubr.f32.mxu0 0.0
        %543 = vmatmul.mubr.f32.gmra.mxu0 %v423
        %v544 = vpop.f32.mrf.mxu0
        %v545 = vadd.f32 0.0, %v544
        %v546 = vpop.f32.mrf.mxu0
        %547 = vmatprep.mubr.f32.mxu0 0.0
        %548 = vmatmul.mubr.f32.gmra.mxu0 %v426
        %v549 = vpop.f32.mrf.mxu0
        %v550 = vadd.f32 0.0, %v549
        %v551 = vpop.f32.mrf.mxu0
        %552 = vmatprep.mubr.f32.mxu0 0.0
        %553 = vmatmul.mubr.f32.gmra.mxu0 %v429
        %v554 = vpop.f32.mrf.mxu0
        %v555 = vadd.f32 0.0, %v554
        %v556 = vpop.f32.mrf.mxu0
        %557 = vmatprep.mubr.f32.mxu0 0.0
        %558 = vmatmul.mubr.f32.gmra.mxu0 %v432
        %v559 = vpop.f32.mrf.mxu0
        %v560 = vadd.f32 0.0, %v559
        %v561 = vpop.f32.mrf.mxu0
        %562 = vmatprep.mubr.f32.mxu0 0.0
        %563 = vmatmul.mubr.f32.gmra.mxu0 %v435
        %v564 = vpop.f32.mrf.mxu0
        %v565 = vadd.f32 0.0, %v564
        %v566 = vpop.f32.mrf.mxu0
        %567 = vmatprep.mubr.f32.mxu0 0.0
        %568 = vmatmul.mubr.f32.gmra.mxu0 %v438
        %v569 = vpop.f32.mrf.mxu0
        %v570 = vadd.f32 0.0, %v569
        %v571 = vpop.f32.mrf.mxu0
        %572 = vmatprep.mubr.f32.mxu0 0.0
        %573 = vmatmul.mubr.f32.gmra.mxu0 %v441
        %v574 = vpop.f32.mrf.mxu0
        %v575 = vadd.f32 0.0, %v574
        %v576 = vpop.f32.mrf.mxu0
        %577 = vmatprep.mubr.f32.mxu0 0.0
        %578 = vmatmul.mubr.f32.gmra.mxu0 %v444
        %v579 = vpop.f32.mrf.mxu0
        %v580 = vadd.f32 0.0, %v579
        %v581 = vpop.f32.mrf.mxu0
        %582 = vmatprep.mubr.f32.mxu0 0.0
        %583 = vmatmul.mubr.f32.gmra.mxu0 %v447
        %v584 = vpop.f32.mrf.mxu0
        %v585 = vadd.f32 0.0, %v584
        %v586 = vpop.f32.mrf.mxu0
        %587 = vmatprep.mubr.f32.mxu0 0.0
        %588 = vmatmul.mubr.f32.gmra.mxu0 %v450
        %v589 = vpop.f32.mrf.mxu0
        %v590 = vadd.f32 0.0, %v589
        %v591 = vpop.f32.mrf.mxu0
        %592 = vmatprep.mubr.f32.mxu0 0.0
        %593 = vmatmul.mubr.f32.gmra.mxu0 %v453
        %v594 = vpop.f32.mrf.mxu0
        %v595 = vadd.f32 0.0, %v594
        %v596 = vpop.f32.mrf.mxu0
        %597 = vmatprep.mubr.f32.mxu0 0.0
        %598 = vmatmul.mubr.f32.gmra.mxu0 %v456
        %v599 = vpop.f32.mrf.mxu0
        %v600 = vadd.f32 0.0, %v599
        %v601 = vpop.f32.mrf.mxu0
        %602 = vdwg.mxu0
        %vm603 = vcmp.gt.f32.partialorder %v525, 0.0
        %vm604 = vcmp.gt.f32.partialorder %v530, 0.0
        %vm605 = vcmp.gt.f32.partialorder %v535, 0.0
        %vm606 = vcmp.gt.f32.partialorder %v540, 0.0
        %vm607 = vcmp.gt.f32.partialorder %v545, 0.0
        %vm608 = vcmp.gt.f32.partialorder %v550, 0.0
        %vm609 = vcmp.gt.f32.partialorder %v555, 0.0
        %vm610 = vcmp.gt.f32.partialorder %v560, 0.0
        %vm611 = vcmp.gt.f32.partialorder %v565, 0.0
        %vm612 = vcmp.gt.f32.partialorder %v570, 0.0
        %vm613 = vcmp.gt.f32.partialorder %v575, 0.0
        %vm614 = vcmp.gt.f32.partialorder %v580, 0.0
        %vm615 = vcmp.gt.f32.partialorder %v585, 0.0
        %vm616 = vcmp.gt.f32.partialorder %v590, 0.0
        %vm617 = vcmp.gt.f32.partialorder %v595, 0.0
        %vm618 = vcmp.gt.f32.partialorder %v600, 0.0
        %v619 = vmul.f32 %v525, 1.442695
        %v620 = vpow.pop %v619
        %v621 = vmul.f32 %v530, 1.442695
        %v622 = vpow.pop %v621
        %v623 = vmul.f32 %v535, 1.442695
        %v624 = vpow.pop %v623
        %v625 = vmul.f32 %v540, 1.442695
        %v626 = vpow.pop %v625
        %v627 = vmul.f32 %v545, 1.442695
        %v628 = vpow.pop %v627
        %v629 = vmul.f32 %v550, 1.442695
        %v630 = vpow.pop %v629
        %v631 = vmul.f32 %v555, 1.442695
        %v632 = vpow.pop %v631
        %v633 = vmul.f32 %v560, 1.442695
        %v634 = vpow.pop %v633
        %v635 = vmul.f32 %v565, 1.442695
        %v636 = vpow.pop %v635
        %v637 = vmul.f32 %v570, 1.442695
        %v638 = vpow.pop %v637
        %v639 = vmul.f32 %v575, 1.442695
        %v640 = vpow.pop %v639
        %v641 = vmul.f32 %v580, 1.442695
        %v642 = vpow.pop %v641
        %v643 = vmul.f32 %v585, 1.442695
        %v644 = vpow.pop %v643
        %v645 = vmul.f32 %v590, 1.442695
        %v646 = vpow.pop %v645
        %v647 = vmul.f32 %v595, 1.442695
        %v648 = vpow.pop %v647
        %v649 = vmul.f32 %v600, 1.442695
        %v650 = vpow.pop %v649
        %v651 = vsub.f32 %v620, 1.0
        %v652 = vsub.f32 %v622, 1.0
        %v653 = vsub.f32 %v624, 1.0
        %v654 = vsub.f32 %v626, 1.0
        %v655 = vsub.f32 %v628, 1.0
        %v656 = vsub.f32 %v630, 1.0
        %v657 = vsub.f32 %v632, 1.0
        %v658 = vsub.f32 %v634, 1.0
        %v659 = vsub.f32 %v636, 1.0
        %v660 = vsub.f32 %v638, 1.0
        %v661 = vsub.f32 %v640, 1.0
        %v662 = vsub.f32 %v642, 1.0
        %v663 = vsub.f32 %v644, 1.0
        %v664 = vsub.f32 %v646, 1.0
        %v665 = vsub.f32 %v648, 1.0
        %v666 = vsub.f32 %v650, 1.0
        %v667 = vsel %vm603, %v525, %v651
        %v668 = vsel %vm604, %v530, %v652
        %v669 = vsel %vm605, %v535, %v653
        %v670 = vsel %vm606, %v540, %v654
        %v671 = vsel %vm607, %v545, %v655
        %v672 = vsel %vm608, %v550, %v656
        %v673 = vsel %vm609, %v555, %v657
        %v674 = vsel %vm610, %v560, %v658
        %v675 = vsel %vm611, %v565, %v659
        %v676 = vsel %vm612, %v570, %v660
        %v677 = vsel %vm613, %v575, %v661
        %v678 = vsel %vm614, %v580, %v662
        %v679 = vsel %vm615, %v585, %v663
        %v680 = vsel %vm616, %v590, %v664
        %v681 = vsel %vm617, %v595, %v665
        %v682 = vsel %vm618, %v600, %v666
        %v683 = vld [vmem:[%s2] sm:$0xff]
        %v684 = vld [vmem:[%s2 + $0x8] sm:$0xff]
        %v685 = vld [vmem:[%s2 + $0x10] sm:$0xff]
        %v686 = vld [vmem:[%s2 + $0x18] sm:$0xff]
        %v687 = vld [vmem:[%s2 + $0x20] sm:$0xff]
        %v688 = vld [vmem:[%s2 + $0x28] sm:$0xff]
        %v689 = vld [vmem:[%s2 + $0x30] sm:$0xff]
        %v690 = vld [vmem:[%s2 + $0x38] sm:$0xff]
        %v691 = vld [vmem:[%s2 + $0x40] sm:$0xff]
        %v692 = vld [vmem:[%s2 + $0x48] sm:$0xff]
        %v693 = vld [vmem:[%s2 + $0x50] sm:$0xff]
        %v694 = vld [vmem:[%s2 + $0x58] sm:$0xff]
        %v695 = vld [vmem:[%s2 + $0x60] sm:$0xff]
        %v696 = vld [vmem:[%s2 + $0x68] sm:$0xff]
        %v697 = vld [vmem:[%s2 + $0x70] sm:$0xff]
        %v698 = vld [vmem:[%s2 + $0x78] sm:$0xff]
        %v699 = vld [vmem:[%s3] sm:$0xff]
        %v700 = vld [vmem:[%s3 + $0x8] sm:$0xff]
        %v701 = vld [vmem:[%s3 + $0x10] sm:$0xff]
        %v702 = vld [vmem:[%s3 + $0x18] sm:$0xff]
        %v703 = vld [vmem:[%s3 + $0x20] sm:$0xff]
        %v704 = vld [vmem:[%s3 + $0x28] sm:$0xff]
        %v705 = vld [vmem:[%s3 + $0x30] sm:$0xff]
        %v706 = vld [vmem:[%s3 + $0x38] sm:$0xff]
        %v707 = vld [vmem:[%s3 + $0x40] sm:$0xff]
        %v708 = vld [vmem:[%s3 + $0x48] sm:$0xff]
        %v709 = vld [vmem:[%s3 + $0x50] sm:$0xff]
        %v710 = vld [vmem:[%s3 + $0x58] sm:$0xff]
        %v711 = vld [vmem:[%s3 + $0x60] sm:$0xff]
        %v712 = vld [vmem:[%s3 + $0x68] sm:$0xff]
        %v713 = vld [vmem:[%s3 + $0x70] sm:$0xff]
        %v714 = vld [vmem:[%s3 + $0x78] sm:$0xff]
        %716 = vset.pattern.permute.xlu0 0
        %717 = vperm.xlu0 %716, %v699
        %v718 = vpop.permute.xlu0 %717
        %721 = vset.pattern.permute.xlu0 0
        %722 = vperm.xlu0 %721, %v700
        %v723 = vpop.permute.xlu0 %722
        %726 = vset.pattern.permute.xlu0 0
        %727 = vperm.xlu0 %726, %v701
        %v728 = vpop.permute.xlu0 %727
        %731 = vset.pattern.permute.xlu0 0
        %732 = vperm.xlu0 %731, %v702
        %v733 = vpop.permute.xlu0 %732
        %736 = vset.pattern.permute.xlu0 0
        %737 = vperm.xlu0 %736, %v703
        %v738 = vpop.permute.xlu0 %737
        %741 = vset.pattern.permute.xlu0 0
        %742 = vperm.xlu0 %741, %v704
        %v743 = vpop.permute.xlu0 %742
        %746 = vset.pattern.permute.xlu0 0
        %747 = vperm.xlu0 %746, %v705
        %v748 = vpop.permute.xlu0 %747
        %751 = vset.pattern.permute.xlu0 0
        %752 = vperm.xlu0 %751, %v706
        %v753 = vpop.permute.xlu0 %752
        %756 = vset.pattern.permute.xlu0 0
        %757 = vperm.xlu0 %756, %v707
        %v758 = vpop.permute.xlu0 %757
        %761 = vset.pattern.permute.xlu0 0
        %762 = vperm.xlu0 %761, %v708
        %v763 = vpop.permute.xlu0 %762
        %766 = vset.pattern.permute.xlu0 0
        %767 = vperm.xlu0 %766, %v709
        %v768 = vpop.permute.xlu0 %767
        %771 = vset.pattern.permute.xlu0 0
        %772 = vperm.xlu0 %771, %v710
        %v773 = vpop.permute.xlu0 %772
        %776 = vset.pattern.permute.xlu0 0
        %777 = vperm.xlu0 %776, %v711
        %v778 = vpop.permute.xlu0 %777
        %781 = vset.pattern.permute.xlu0 0
        %782 = vperm.xlu0 %781, %v712
        %v783 = vpop.permute.xlu0 %782
        %786 = vset.pattern.permute.xlu0 0
        %787 = vperm.xlu0 %786, %v713
        %v788 = vpop.permute.xlu0 %787
        %791 = vset.pattern.permute.xlu0 0
        %792 = vperm.xlu0 %791, %v714
        %v793 = vpop.permute.xlu0 %792
        %795 = vmatprep.subr.mxu0 0.0
        %796 = vmatpush1.msra.mxu0 %v682
        %797 = vmatprep.subr.mxu0 0.0
        %798 = vmatpush1.msra.mxu0 %v681
        %799 = vmatprep.subr.mxu0 0.0
        %800 = vmatpush1.msra.mxu0 %v680
        %801 = vmatprep.subr.mxu0 0.0
        %802 = vmatpush1.msra.mxu0 %v679
        %803 = vmatprep.subr.mxu0 0.0
        %804 = vmatpush1.msra.mxu0 %v678
        %805 = vmatprep.subr.mxu0 0.0
        %806 = vmatpush1.msra.mxu0 %v677
        %807 = vmatprep.subr.mxu0 0.0
        %808 = vmatpush1.msra.mxu0 %v676
        %809 = vmatprep.subr.mxu0 0.0
        %810 = vmatpush1.msra.mxu0 %v675
        %811 = vmatprep.subr.mxu0 0.0
        %812 = vmatpush1.msra.mxu0 %v674
        %813 = vmatprep.subr.mxu0 0.0
        %814 = vmatpush1.msra.mxu0 %v673
        %815 = vmatprep.subr.mxu0 0.0
        %816 = vmatpush1.msra.mxu0 %v672
        %817 = vmatprep.subr.mxu0 0.0
        %818 = vmatpush1.msra.mxu0 %v671
        %819 = vmatprep.subr.mxu0 0.0
        %820 = vmatpush1.msra.mxu0 %v670
        %821 = vmatprep.subr.mxu0 0.0
        %822 = vmatpush1.msra.mxu0 %v669
        %823 = vmatprep.subr.mxu0 0.0
        %824 = vmatpush1.msra.mxu0 %v668
        %825 = vmatprep.subr.mxu0 0.0
        %826 = vmatpush1.msra.mxu0 %v667
        %827 = vmatprep.subr.mxu0 0.0
        %828 = vmatpush2.msra.mxu0 0.0
        %829 = vmatprep.subr.mxu0 0.0
        %830 = vmatpush2.msra.mxu0 0.0
        %831 = vmatprep.subr.mxu0 0.0
        %832 = vmatpush2.msra.mxu0 0.0
        %833 = vmatprep.subr.mxu0 0.0
        %834 = vmatpush2.msra.mxu0 0.0
        %835 = vmatprep.subr.mxu0 0.0
        %836 = vmatpush2.msra.mxu0 0.0
        %837 = vmatprep.subr.mxu0 0.0
        %838 = vmatpush2.msra.mxu0 0.0
        %839 = vmatprep.subr.mxu0 0.0
        %840 = vmatpush2.msra.mxu0 0.0
        %841 = vmatprep.subr.mxu0 0.0
        %842 = vmatpush2.msra.mxu0 0.0
        %843 = vmatprep.subr.mxu0 0.0
        %844 = vmatpush2.msra.mxu0 0.0
        %845 = vmatprep.subr.mxu0 0.0
        %846 = vmatpush2.msra.mxu0 0.0
        %847 = vmatprep.subr.mxu0 0.0
        %848 = vmatpush2.msra.mxu0 0.0
        %849 = vmatprep.subr.mxu0 0.0
        %850 = vmatpush2.msra.mxu0 0.0
        %851 = vmatprep.subr.mxu0 0.0
        %852 = vmatpush2.msra.mxu0 0.0
        %853 = vmatprep.subr.mxu0 0.0
        %854 = vmatpush2.msra.mxu0 0.0
        %855 = vmatprep.subr.mxu0 0.0
        %856 = vmatpush2.msra.mxu0 0.0
        %857 = vmatprep.subr.mxu0 0.0
        %858 = vmatpush2.msra.mxu0 0.0
        %859 = vmatprep.mubr.f32.mxu0 0.0
        %860 = vmatmul.mubr.f32.gmra.mxu0 %v683
        %v861 = vpop.f32.mrf.mxu0
        %v862 = vadd.f32 %v718, %v861
        %v863 = vpop.f32.mrf.mxu0
        %864 = vmatprep.mubr.f32.mxu0 0.0
        %865 = vmatmul.mubr.f32.gmra.mxu0 %v684
        %v866 = vpop.f32.mrf.mxu0
        %v867 = vadd.f32 %v723, %v866
        %v868 = vpop.f32.mrf.mxu0
        %869 = vmatprep.mubr.f32.mxu0 0.0
        %870 = vmatmul.mubr.f32.gmra.mxu0 %v685
        %v871 = vpop.f32.mrf.mxu0
        %v872 = vadd.f32 %v728, %v871
        %v873 = vpop.f32.mrf.mxu0
        %874 = vmatprep.mubr.f32.mxu0 0.0
        %875 = vmatmul.mubr.f32.gmra.mxu0 %v686
        %v876 = vpop.f32.mrf.mxu0
        %v877 = vadd.f32 %v733, %v876
        %v878 = vpop.f32.mrf.mxu0
        %879 = vmatprep.mubr.f32.mxu0 0.0
        %880 = vmatmul.mubr.f32.gmra.mxu0 %v687
        %v881 = vpop.f32.mrf.mxu0
        %v882 = vadd.f32 %v738, %v881
        %v883 = vpop.f32.mrf.mxu0
        %884 = vmatprep.mubr.f32.mxu0 0.0
        %885 = vmatmul.mubr.f32.gmra.mxu0 %v688
        %v886 = vpop.f32.mrf.mxu0
        %v887 = vadd.f32 %v743, %v886
        %v888 = vpop.f32.mrf.mxu0
        %889 = vmatprep.mubr.f32.mxu0 0.0
        %890 = vmatmul.mubr.f32.gmra.mxu0 %v689
        %v891 = vpop.f32.mrf.mxu0
        %v892 = vadd.f32 %v748, %v891
        %v893 = vpop.f32.mrf.mxu0
        %894 = vmatprep.mubr.f32.mxu0 0.0
        %895 = vmatmul.mubr.f32.gmra.mxu0 %v690
        %v896 = vpop.f32.mrf.mxu0
        %v897 = vadd.f32 %v753, %v896
        %v898 = vpop.f32.mrf.mxu0
        %899 = vmatprep.mubr.f32.mxu0 0.0
        %900 = vmatmul.mubr.f32.gmra.mxu0 %v691
        %v901 = vpop.f32.mrf.mxu0
        %v902 = vadd.f32 %v758, %v901
        %v903 = vpop.f32.mrf.mxu0
        %904 = vmatprep.mubr.f32.mxu0 0.0
        %905 = vmatmul.mubr.f32.gmra.mxu0 %v692
        %v906 = vpop.f32.mrf.mxu0
        %v907 = vadd.f32 %v763, %v906
        %v908 = vpop.f32.mrf.mxu0
        %909 = vmatprep.mubr.f32.mxu0 0.0
        %910 = vmatmul.mubr.f32.gmra.mxu0 %v693
        %v911 = vpop.f32.mrf.mxu0
        %v912 = vadd.f32 %v768, %v911
        %v913 = vpop.f32.mrf.mxu0
        %914 = vmatprep.mubr.f32.mxu0 0.0
        %915 = vmatmul.mubr.f32.gmra.mxu0 %v694
        %v916 = vpop.f32.mrf.mxu0
        %v917 = vadd.f32 %v773, %v916
        %v918 = vpop.f32.mrf.mxu0
        %919 = vmatprep.mubr.f32.mxu0 0.0
        %920 = vmatmul.mubr.f32.gmra.mxu0 %v695
        %v921 = vpop.f32.mrf.mxu0
        %v922 = vadd.f32 %v778, %v921
        %v923 = vpop.f32.mrf.mxu0
        %924 = vmatprep.mubr.f32.mxu0 0.0
        %925 = vmatmul.mubr.f32.gmra.mxu0 %v696
        %v926 = vpop.f32.mrf.mxu0
        %v927 = vadd.f32 %v783, %v926
        %v928 = vpop.f32.mrf.mxu0
        %929 = vmatprep.mubr.f32.mxu0 0.0
        %930 = vmatmul.mubr.f32.gmra.mxu0 %v697
        %v931 = vpop.f32.mrf.mxu0
        %v932 = vadd.f32 %v788, %v931
        %v933 = vpop.f32.mrf.mxu0
        %934 = vmatprep.mubr.f32.mxu0 0.0
        %935 = vmatmul.mubr.f32.gmra.mxu0 %v698
        %v936 = vpop.f32.mrf.mxu0
        %v937 = vadd.f32 %v793, %v936
        %v938 = vpop.f32.mrf.mxu0
        %939 = vdwg.mxu0
        %vm940 = vcmp.gt.f32.partialorder %v862, 0.0
        %vm941 = vcmp.gt.f32.partialorder %v867, 0.0
        %vm942 = vcmp.gt.f32.partialorder %v872, 0.0
        %vm943 = vcmp.gt.f32.partialorder %v877, 0.0
        %vm944 = vcmp.gt.f32.partialorder %v882, 0.0
        %vm945 = vcmp.gt.f32.partialorder %v887, 0.0
        %vm946 = vcmp.gt.f32.partialorder %v892, 0.0
        %vm947 = vcmp.gt.f32.partialorder %v897, 0.0
        %vm948 = vcmp.gt.f32.partialorder %v902, 0.0
        %vm949 = vcmp.gt.f32.partialorder %v907, 0.0
        %vm950 = vcmp.gt.f32.partialorder %v912, 0.0
        %vm951 = vcmp.gt.f32.partialorder %v917, 0.0
        %vm952 = vcmp.gt.f32.partialorder %v922, 0.0
        %vm953 = vcmp.gt.f32.partialorder %v927, 0.0
        %vm954 = vcmp.gt.f32.partialorder %v932, 0.0
        %vm955 = vcmp.gt.f32.partialorder %v937, 0.0
        %v956 = vmul.f32 %v862, 1.442695
        %v957 = vpow.pop %v956
        %v958 = vmul.f32 %v867, 1.442695
        %v959 = vpow.pop %v958
        %v960 = vmul.f32 %v872, 1.442695
        %v961 = vpow.pop %v960
        %v962 = vmul.f32 %v877, 1.442695
        %v963 = vpow.pop %v962
        %v964 = vmul.f32 %v882, 1.442695
        %v965 = vpow.pop %v964
        %v966 = vmul.f32 %v887, 1.442695
        %v967 = vpow.pop %v966
        %v968 = vmul.f32 %v892, 1.442695
        %v969 = vpow.pop %v968
        %v970 = vmul.f32 %v897, 1.442695
        %v971 = vpow.pop %v970
        %v972 = vmul.f32 %v902, 1.442695
        %v973 = vpow.pop %v972
        %v974 = vmul.f32 %v907, 1.442695
        %v975 = vpow.pop %v974
        %v976 = vmul.f32 %v912, 1.442695
        %v977 = vpow.pop %v976
        %v978 = vmul.f32 %v917, 1.442695
        %v979 = vpow.pop %v978
        %v980 = vmul.f32 %v922, 1.442695
        %v981 = vpow.pop %v980
        %v982 = vmul.f32 %v927, 1.442695
        %v983 = vpow.pop %v982
        %v984 = vmul.f32 %v932, 1.442695
        %v985 = vpow.pop %v984
        %v986 = vmul.f32 %v937, 1.442695
        %v987 = vpow.pop %v986
        %v988 = vsub.f32 %v957, 1.0
        %v989 = vsub.f32 %v959, 1.0
        %v990 = vsub.f32 %v961, 1.0
        %v991 = vsub.f32 %v963, 1.0
        %v992 = vsub.f32 %v965, 1.0
        %v993 = vsub.f32 %v967, 1.0
        %v994 = vsub.f32 %v969, 1.0
        %v995 = vsub.f32 %v971, 1.0
        %v996 = vsub.f32 %v973, 1.0
        %v997 = vsub.f32 %v975, 1.0
        %v998 = vsub.f32 %v977, 1.0
        %v999 = vsub.f32 %v979, 1.0
        %v1000 = vsub.f32 %v981, 1.0
        %v1001 = vsub.f32 %v983, 1.0
        %v1002 = vsub.f32 %v985, 1.0
        %v1003 = vsub.f32 %v987, 1.0
        %v1004 = vsel %vm940, %v862, %v988
        %v1005 = vsel %vm941, %v867, %v989
        %v1006 = vsel %vm942, %v872, %v990
        %v1007 = vsel %vm943, %v877, %v991
        %v1008 = vsel %vm944, %v882, %v992
        %v1009 = vsel %vm945, %v887, %v993
        %v1010 = vsel %vm946, %v892, %v994
        %v1011 = vsel %vm947, %v897, %v995
        %v1012 = vsel %vm948, %v902, %v996
        %v1013 = vsel %vm949, %v907, %v997
        %v1014 = vsel %vm950, %v912, %v998
        %v1015 = vsel %vm951, %v917, %v999
        %v1016 = vsel %vm952, %v922, %v1000
        %v1017 = vsel %vm953, %v927, %v1001
        %v1018 = vsel %vm954, %v932, %v1002
        %v1019 = vsel %vm955, %v937, %v1003
        %v1020 = vld [vmem:[%s4] sm:$0xff]
        %v1021 = vld [vmem:[%s4 + $0x8] sm:$0xff]
        %v1022 = vld [vmem:[%s4 + $0x10] sm:$0xff]
        %v1023 = vld [vmem:[%s4 + $0x18] sm:$0xff]
        %v1024 = vld [vmem:[%s4 + $0x20] sm:$0xff]
        %v1025 = vld [vmem:[%s4 + $0x28] sm:$0xff]
        %v1026 = vld [vmem:[%s4 + $0x30] sm:$0xff]
        %v1027 = vld [vmem:[%s4 + $0x38] sm:$0xff]
        %v1028 = vld [vmem:[%s4 + $0x40] sm:$0xff]
        %v1029 = vld [vmem:[%s4 + $0x48] sm:$0xff]
        %v1030 = vld [vmem:[%s4 + $0x50] sm:$0xff]
        %v1031 = vld [vmem:[%s4 + $0x58] sm:$0xff]
        %v1032 = vld [vmem:[%s4 + $0x60] sm:$0xff]
        %v1033 = vld [vmem:[%s4 + $0x68] sm:$0xff]
        %v1034 = vld [vmem:[%s4 + $0x70] sm:$0xff]
        %v1035 = vld [vmem:[%s4 + $0x78] sm:$0xff]
        %v1036 = vld [vmem:[%s5] sm:$0xff]
        %v1037 = vld [vmem:[%s5 + $0x8] sm:$0xff]
        %v1038 = vld [vmem:[%s5 + $0x10] sm:$0xff]
        %v1039 = vld [vmem:[%s5 + $0x18] sm:$0xff]
        %v1040 = vld [vmem:[%s5 + $0x20] sm:$0xff]
        %v1041 = vld [vmem:[%s5 + $0x28] sm:$0xff]
        %v1042 = vld [vmem:[%s5 + $0x30] sm:$0xff]
        %v1043 = vld [vmem:[%s5 + $0x38] sm:$0xff]
        %v1044 = vld [vmem:[%s5 + $0x40] sm:$0xff]
        %v1045 = vld [vmem:[%s5 + $0x48] sm:$0xff]
        %v1046 = vld [vmem:[%s5 + $0x50] sm:$0xff]
        %v1047 = vld [vmem:[%s5 + $0x58] sm:$0xff]
        %v1048 = vld [vmem:[%s5 + $0x60] sm:$0xff]
        %v1049 = vld [vmem:[%s5 + $0x68] sm:$0xff]
        %v1050 = vld [vmem:[%s5 + $0x70] sm:$0xff]
        %v1051 = vld [vmem:[%s5 + $0x78] sm:$0xff]
        %1053 = vset.pattern.permute.xlu0 0
        %1054 = vperm.xlu0 %1053, %v1036
        %v1055 = vpop.permute.xlu0 %1054
        %1058 = vset.pattern.permute.xlu0 0
        %1059 = vperm.xlu0 %1058, %v1037
        %v1060 = vpop.permute.xlu0 %1059
        %1063 = vset.pattern.permute.xlu0 0
        %1064 = vperm.xlu0 %1063, %v1038
        %v1065 = vpop.permute.xlu0 %1064
        %1068 = vset.pattern.permute.xlu0 0
        %1069 = vperm.xlu0 %1068, %v1039
        %v1070 = vpop.permute.xlu0 %1069
        %1073 = vset.pattern.permute.xlu0 0
        %1074 = vperm.xlu0 %1073, %v1040
        %v1075 = vpop.permute.xlu0 %1074
        %1078 = vset.pattern.permute.xlu0 0
        %1079 = vperm.xlu0 %1078, %v1041
        %v1080 = vpop.permute.xlu0 %1079
        %1083 = vset.pattern.permute.xlu0 0
        %1084 = vperm.xlu0 %1083, %v1042
        %v1085 = vpop.permute.xlu0 %1084
        %1088 = vset.pattern.permute.xlu0 0
        %1089 = vperm.xlu0 %1088, %v1043
        %v1090 = vpop.permute.xlu0 %1089
        %1093 = vset.pattern.permute.xlu0 0
        %1094 = vperm.xlu0 %1093, %v1044
        %v1095 = vpop.permute.xlu0 %1094
        %1098 = vset.pattern.permute.xlu0 0
        %1099 = vperm.xlu0 %1098, %v1045
        %v1100 = vpop.permute.xlu0 %1099
        %1103 = vset.pattern.permute.xlu0 0
        %1104 = vperm.xlu0 %1103, %v1046
        %v1105 = vpop.permute.xlu0 %1104
        %1108 = vset.pattern.permute.xlu0 0
        %1109 = vperm.xlu0 %1108, %v1047
        %v1110 = vpop.permute.xlu0 %1109
        %1113 = vset.pattern.permute.xlu0 0
        %1114 = vperm.xlu0 %1113, %v1048
        %v1115 = vpop.permute.xlu0 %1114
        %1118 = vset.pattern.permute.xlu0 0
        %1119 = vperm.xlu0 %1118, %v1049
        %v1120 = vpop.permute.xlu0 %1119
        %1123 = vset.pattern.permute.xlu0 0
        %1124 = vperm.xlu0 %1123, %v1050
        %v1125 = vpop.permute.xlu0 %1124
        %1128 = vset.pattern.permute.xlu0 0
        %1129 = vperm.xlu0 %1128, %v1051
        %v1130 = vpop.permute.xlu0 %1129
        %1132 = vmatprep.subr.mxu0 0.0
        %1133 = vmatpush1.msra.mxu0 %v1019
        %1134 = vmatprep.subr.mxu0 0.0
        %1135 = vmatpush1.msra.mxu0 %v1018
        %1136 = vmatprep.subr.mxu0 0.0
        %1137 = vmatpush1.msra.mxu0 %v1017
        %1138 = vmatprep.subr.mxu0 0.0
        %1139 = vmatpush1.msra.mxu0 %v1016
        %1140 = vmatprep.subr.mxu0 0.0
        %1141 = vmatpush1.msra.mxu0 %v1015
        %1142 = vmatprep.subr.mxu0 0.0
        %1143 = vmatpush1.msra.mxu0 %v1014
        %1144 = vmatprep.subr.mxu0 0.0
        %1145 = vmatpush1.msra.mxu0 %v1013
        %1146 = vmatprep.subr.mxu0 0.0
        %1147 = vmatpush1.msra.mxu0 %v1012
        %1148 = vmatprep.subr.mxu0 0.0
        %1149 = vmatpush1.msra.mxu0 %v1011
        %1150 = vmatprep.subr.mxu0 0.0
        %1151 = vmatpush1.msra.mxu0 %v1010
        %1152 = vmatprep.subr.mxu0 0.0
        %1153 = vmatpush1.msra.mxu0 %v1009
        %1154 = vmatprep.subr.mxu0 0.0
        %1155 = vmatpush1.msra.mxu0 %v1008
        %1156 = vmatprep.subr.mxu0 0.0
        %1157 = vmatpush1.msra.mxu0 %v1007
        %1158 = vmatprep.subr.mxu0 0.0
        %1159 = vmatpush1.msra.mxu0 %v1006
        %1160 = vmatprep.subr.mxu0 0.0
        %1161 = vmatpush1.msra.mxu0 %v1005
        %1162 = vmatprep.subr.mxu0 0.0
        %1163 = vmatpush1.msra.mxu0 %v1004
        %1164 = vmatprep.subr.mxu0 0.0
        %1165 = vmatpush2.msra.mxu0 0.0
        %1166 = vmatprep.subr.mxu0 0.0
        %1167 = vmatpush2.msra.mxu0 0.0
        %1168 = vmatprep.subr.mxu0 0.0
        %1169 = vmatpush2.msra.mxu0 0.0
        %1170 = vmatprep.subr.mxu0 0.0
        %1171 = vmatpush2.msra.mxu0 0.0
        %1172 = vmatprep.subr.mxu0 0.0
        %1173 = vmatpush2.msra.mxu0 0.0
        %1174 = vmatprep.subr.mxu0 0.0
        %1175 = vmatpush2.msra.mxu0 0.0
        %1176 = vmatprep.subr.mxu0 0.0
        %1177 = vmatpush2.msra.mxu0 0.0
        %1178 = vmatprep.subr.mxu0 0.0
        %1179 = vmatpush2.msra.mxu0 0.0
        %1180 = vmatprep.subr.mxu0 0.0
        %1181 = vmatpush2.msra.mxu0 0.0
        %1182 = vmatprep.subr.mxu0 0.0
        %1183 = vmatpush2.msra.mxu0 0.0
        %1184 = vmatprep.subr.mxu0 0.0
        %1185 = vmatpush2.msra.mxu0 0.0
        %1186 = vmatprep.subr.mxu0 0.0
        %1187 = vmatpush2.msra.mxu0 0.0
        %1188 = vmatprep.subr.mxu0 0.0
        %1189 = vmatpush2.msra.mxu0 0.0
        %1190 = vmatprep.subr.mxu0 0.0
        %1191 = vmatpush2.msra.mxu0 0.0
        %1192 = vmatprep.subr.mxu0 0.0
        %1193 = vmatpush2.msra.mxu0 0.0
        %1194 = vmatprep.subr.mxu0 0.0
        %1195 = vmatpush2.msra.mxu0 0.0
        %1196 = vmatprep.mubr.f32.mxu0 0.0
        %1197 = vmatmul.mubr.f32.gmra.mxu0 %v1020
        %v1198 = vpop.f32.mrf.mxu0
        %v1199 = vadd.f32 %v1055, %v1198
        %v1200 = vpop.f32.mrf.mxu0
        %1201 = vmatprep.mubr.f32.mxu0 0.0
        %1202 = vmatmul.mubr.f32.gmra.mxu0 %v1021
        %v1203 = vpop.f32.mrf.mxu0
        %v1204 = vadd.f32 %v1060, %v1203
        %v1205 = vpop.f32.mrf.mxu0
        %1206 = vmatprep.mubr.f32.mxu0 0.0
        %1207 = vmatmul.mubr.f32.gmra.mxu0 %v1022
        %v1208 = vpop.f32.mrf.mxu0
        %v1209 = vadd.f32 %v1065, %v1208
        %v1210 = vpop.f32.mrf.mxu0
        %1211 = vmatprep.mubr.f32.mxu0 0.0
        %1212 = vmatmul.mubr.f32.gmra.mxu0 %v1023
        %v1213 = vpop.f32.mrf.mxu0
        %v1214 = vadd.f32 %v1070, %v1213
        %v1215 = vpop.f32.mrf.mxu0
        %1216 = vmatprep.mubr.f32.mxu0 0.0
        %1217 = vmatmul.mubr.f32.gmra.mxu0 %v1024
        %v1218 = vpop.f32.mrf.mxu0
        %v1219 = vadd.f32 %v1075, %v1218
        %v1220 = vpop.f32.mrf.mxu0
        %1221 = vmatprep.mubr.f32.mxu0 0.0
        %1222 = vmatmul.mubr.f32.gmra.mxu0 %v1025
        %v1223 = vpop.f32.mrf.mxu0
        %v1224 = vadd.f32 %v1080, %v1223
        %v1225 = vpop.f32.mrf.mxu0
        %1226 = vmatprep.mubr.f32.mxu0 0.0
        %1227 = vmatmul.mubr.f32.gmra.mxu0 %v1026
        %v1228 = vpop.f32.mrf.mxu0
        %v1229 = vadd.f32 %v1085, %v1228
        %v1230 = vpop.f32.mrf.mxu0
        %1231 = vmatprep.mubr.f32.mxu0 0.0
        %1232 = vmatmul.mubr.f32.gmra.mxu0 %v1027
        %v1233 = vpop.f32.mrf.mxu0
        %v1234 = vadd.f32 %v1090, %v1233
        %v1235 = vpop.f32.mrf.mxu0
        %1236 = vmatprep.mubr.f32.mxu0 0.0
        %1237 = vmatmul.mubr.f32.gmra.mxu0 %v1028
        %v1238 = vpop.f32.mrf.mxu0
        %v1239 = vadd.f32 %v1095, %v1238
        %v1240 = vpop.f32.mrf.mxu0
        %1241 = vmatprep.mubr.f32.mxu0 0.0
        %1242 = vmatmul.mubr.f32.gmra.mxu0 %v1029
        %v1243 = vpop.f32.mrf.mxu0
        %v1244 = vadd.f32 %v1100, %v1243
        %v1245 = vpop.f32.mrf.mxu0
        %1246 = vmatprep.mubr.f32.mxu0 0.0
        %1247 = vmatmul.mubr.f32.gmra.mxu0 %v1030
        %v1248 = vpop.f32.mrf.mxu0
        %v1249 = vadd.f32 %v1105, %v1248
        %v1250 = vpop.f32.mrf.mxu0
        %1251 = vmatprep.mubr.f32.mxu0 0.0
        %1252 = vmatmul.mubr.f32.gmra.mxu0 %v1031
        %v1253 = vpop.f32.mrf.mxu0
        %v1254 = vadd.f32 %v1110, %v1253
        %v1255 = vpop.f32.mrf.mxu0
        %1256 = vmatprep.mubr.f32.mxu0 0.0
        %1257 = vmatmul.mubr.f32.gmra.mxu0 %v1032
        %v1258 = vpop.f32.mrf.mxu0
        %v1259 = vadd.f32 %v1115, %v1258
        %v1260 = vpop.f32.mrf.mxu0
        %1261 = vmatprep.mubr.f32.mxu0 0.0
        %1262 = vmatmul.mubr.f32.gmra.mxu0 %v1033
        %v1263 = vpop.f32.mrf.mxu0
        %v1264 = vadd.f32 %v1120, %v1263
        %v1265 = vpop.f32.mrf.mxu0
        %1266 = vmatprep.mubr.f32.mxu0 0.0
        %1267 = vmatmul.mubr.f32.gmra.mxu0 %v1034
        %v1268 = vpop.f32.mrf.mxu0
        %v1269 = vadd.f32 %v1125, %v1268
        %v1270 = vpop.f32.mrf.mxu0
        %1271 = vmatprep.mubr.f32.mxu0 0.0
        %1272 = vmatmul.mubr.f32.gmra.mxu0 %v1035
        %v1273 = vpop.f32.mrf.mxu0
        %v1274 = vadd.f32 %v1130, %v1273
        %v1275 = vpop.f32.mrf.mxu0
        %1276 = vdwg.mxu0
        %vm1277 = vcmp.gt.f32.partialorder %v1199, 0.0
        %vm1278 = vcmp.gt.f32.partialorder %v1204, 0.0
        %vm1279 = vcmp.gt.f32.partialorder %v1209, 0.0
        %vm1280 = vcmp.gt.f32.partialorder %v1214, 0.0
        %vm1281 = vcmp.gt.f32.partialorder %v1219, 0.0
        %vm1282 = vcmp.gt.f32.partialorder %v1224, 0.0
        %vm1283 = vcmp.gt.f32.partialorder %v1229, 0.0
        %vm1284 = vcmp.gt.f32.partialorder %v1234, 0.0
        %vm1285 = vcmp.gt.f32.partialorder %v1239, 0.0
        %vm1286 = vcmp.gt.f32.partialorder %v1244, 0.0
        %vm1287 = vcmp.gt.f32.partialorder %v1249, 0.0
        %vm1288 = vcmp.gt.f32.partialorder %v1254, 0.0
        %vm1289 = vcmp.gt.f32.partialorder %v1259, 0.0
        %vm1290 = vcmp.gt.f32.partialorder %v1264, 0.0
        %vm1291 = vcmp.gt.f32.partialorder %v1269, 0.0
        %vm1292 = vcmp.gt.f32.partialorder %v1274, 0.0
        %v1293 = vmul.f32 %v1199, 1.442695
        %v1294 = vpow.pop %v1293
        %v1295 = vmul.f32 %v1204, 1.442695
        %v1296 = vpow.pop %v1295
        %v1297 = vmul.f32 %v1209, 1.442695
        %v1298 = vpow.pop %v1297
        %v1299 = vmul.f32 %v1214, 1.442695
        %v1300 = vpow.pop %v1299
        %v1301 = vmul.f32 %v1219, 1.442695
        %v1302 = vpow.pop %v1301
        %v1303 = vmul.f32 %v1224, 1.442695
        %v1304 = vpow.pop %v1303
        %v1305 = vmul.f32 %v1229, 1.442695
        %v1306 = vpow.pop %v1305
        %v1307 = vmul.f32 %v1234, 1.442695
        %v1308 = vpow.pop %v1307
        %v1309 = vmul.f32 %v1239, 1.442695
        %v1310 = vpow.pop %v1309
        %v1311 = vmul.f32 %v1244, 1.442695
        %v1312 = vpow.pop %v1311
        %v1313 = vmul.f32 %v1249, 1.442695
        %v1314 = vpow.pop %v1313
        %v1315 = vmul.f32 %v1254, 1.442695
        %v1316 = vpow.pop %v1315
        %v1317 = vmul.f32 %v1259, 1.442695
        %v1318 = vpow.pop %v1317
        %v1319 = vmul.f32 %v1264, 1.442695
        %v1320 = vpow.pop %v1319
        %v1321 = vmul.f32 %v1269, 1.442695
        %v1322 = vpow.pop %v1321
        %v1323 = vmul.f32 %v1274, 1.442695
        %v1324 = vpow.pop %v1323
        %v1325 = vsub.f32 %v1294, 1.0
        %v1326 = vsub.f32 %v1296, 1.0
        %v1327 = vsub.f32 %v1298, 1.0
        %v1328 = vsub.f32 %v1300, 1.0
        %v1329 = vsub.f32 %v1302, 1.0
        %v1330 = vsub.f32 %v1304, 1.0
        %v1331 = vsub.f32 %v1306, 1.0
        %v1332 = vsub.f32 %v1308, 1.0
        %v1333 = vsub.f32 %v1310, 1.0
        %v1334 = vsub.f32 %v1312, 1.0
        %v1335 = vsub.f32 %v1314, 1.0
        %v1336 = vsub.f32 %v1316, 1.0
        %v1337 = vsub.f32 %v1318, 1.0
        %v1338 = vsub.f32 %v1320, 1.0
        %v1339 = vsub.f32 %v1322, 1.0
        %v1340 = vsub.f32 %v1324, 1.0
        %v1341 = vsel %vm1277, %v1199, %v1325
        %v1342 = vsel %vm1278, %v1204, %v1326
        %v1343 = vsel %vm1279, %v1209, %v1327
        %v1344 = vsel %vm1280, %v1214, %v1328
        %v1345 = vsel %vm1281, %v1219, %v1329
        %v1346 = vsel %vm1282, %v1224, %v1330
        %v1347 = vsel %vm1283, %v1229, %v1331
        %v1348 = vsel %vm1284, %v1234, %v1332
        %v1349 = vsel %vm1285, %v1239, %v1333
        %v1350 = vsel %vm1286, %v1244, %v1334
        %v1351 = vsel %vm1287, %v1249, %v1335
        %v1352 = vsel %vm1288, %v1254, %v1336
        %v1353 = vsel %vm1289, %v1259, %v1337
        %v1354 = vsel %vm1290, %v1264, %v1338
        %v1355 = vsel %vm1291, %v1269, %v1339
        %v1356 = vsel %vm1292, %v1274, %v1340
        %v1357 = vld [vmem:[%s6] sm:$0xff]
        %1358 = vmatprep.subr.mxu0 0.0
        %1359 = vmatpush1.msra.mxu0 %v1356
        %1360 = vmatprep.subr.mxu0 0.0
        %1361 = vmatpush1.msra.mxu0 %v1355
        %1362 = vmatprep.subr.mxu0 0.0
        %1363 = vmatpush1.msra.mxu0 %v1354
        %1364 = vmatprep.subr.mxu0 0.0
        %1365 = vmatpush1.msra.mxu0 %v1353
        %1366 = vmatprep.subr.mxu0 0.0
        %1367 = vmatpush1.msra.mxu0 %v1352
        %1368 = vmatprep.subr.mxu0 0.0
        %1369 = vmatpush1.msra.mxu0 %v1351
        %1370 = vmatprep.subr.mxu0 0.0
        %1371 = vmatpush1.msra.mxu0 %v1350
        %1372 = vmatprep.subr.mxu0 0.0
        %1373 = vmatpush1.msra.mxu0 %v1349
        %1374 = vmatprep.subr.mxu0 0.0
        %1375 = vmatpush1.msra.mxu0 %v1348
        %1376 = vmatprep.subr.mxu0 0.0
        %1377 = vmatpush1.msra.mxu0 %v1347
        %1378 = vmatprep.subr.mxu0 0.0
        %1379 = vmatpush1.msra.mxu0 %v1346
        %1380 = vmatprep.subr.mxu0 0.0
        %1381 = vmatpush1.msra.mxu0 %v1345
        %1382 = vmatprep.subr.mxu0 0.0
        %1383 = vmatpush1.msra.mxu0 %v1344
        %1384 = vmatprep.subr.mxu0 0.0
        %1385 = vmatpush1.msra.mxu0 %v1343
        %1386 = vmatprep.subr.mxu0 0.0
        %1387 = vmatpush1.msra.mxu0 %v1342
        %1388 = vmatprep.subr.mxu0 0.0
        %1389 = vmatpush1.msra.mxu0 %v1341
        %1390 = vmatprep.subr.mxu0 0.0
        %1391 = vmatpush2.msra.mxu0 0.0
        %1392 = vmatprep.subr.mxu0 0.0
        %1393 = vmatpush2.msra.mxu0 0.0
        %1394 = vmatprep.subr.mxu0 0.0
        %1395 = vmatpush2.msra.mxu0 0.0
        %1396 = vmatprep.subr.mxu0 0.0
        %1397 = vmatpush2.msra.mxu0 0.0
        %1398 = vmatprep.subr.mxu0 0.0
        %1399 = vmatpush2.msra.mxu0 0.0
        %1400 = vmatprep.subr.mxu0 0.0
        %1401 = vmatpush2.msra.mxu0 0.0
        %1402 = vmatprep.subr.mxu0 0.0
        %1403 = vmatpush2.msra.mxu0 0.0
        %1404 = vmatprep.subr.mxu0 0.0
        %1405 = vmatpush2.msra.mxu0 0.0
        %1406 = vmatprep.subr.mxu0 0.0
        %1407 = vmatpush2.msra.mxu0 0.0
        %1408 = vmatprep.subr.mxu0 0.0
        %1409 = vmatpush2.msra.mxu0 0.0
        %1410 = vmatprep.subr.mxu0 0.0
        %1411 = vmatpush2.msra.mxu0 0.0
        %1412 = vmatprep.subr.mxu0 0.0
        %1413 = vmatpush2.msra.mxu0 0.0
        %1414 = vmatprep.subr.mxu0 0.0
        %1415 = vmatpush2.msra.mxu0 0.0
        %1416 = vmatprep.subr.mxu0 0.0
        %1417 = vmatpush2.msra.mxu0 0.0
        %1418 = vmatprep.subr.mxu0 0.0
        %1419 = vmatpush2.msra.mxu0 0.0
        %1420 = vmatprep.subr.mxu0 0.0
        %1421 = vmatpush2.msra.mxu0 0.0
        %1422 = vmatprep.mubr.f32.mxu0 0.0
        %1423 = vmatmul.mubr.f32.gmra.mxu0 %v1357
        %v1424 = vpop.f32.mrf.mxu0
        %v1425 = vadd.f32 0.0, %v1424
        %v1426 = vpop.f32.mrf.mxu0
        %1427 = vdwg.mxu0
        %v1428 = vld [vmem:[#allocation2] sm:$0x1]
        %1430 = vset.pattern.permute.xlu0 0
        %1431 = vperm.xlu0 %1430, %v1428
        %v1432 = vpop.permute.xlu0 %1431
        %v1434 = vlaneseq
        %v1435 = vshrl.u32 %v1434, 7
        %v1436 = vsub.s32 0, %v1435
        %v1437 = vrot.slane %v1432, %v1436
        %v1438 = vadd.f32 %v1425, %v1437
        %vm1439 = vcmp.gt.f32.partialorder %v1438, 0.0
        %v1440 = vadd.f32 %v1438, 1.0
        %v1441 = vmul.f32 %v1438, 1.442695
        %v1442 = vpow.pop %v1441
        %v1443 = vsel %vm1439, %v1440, %v1442
        %v1444 = vsub.f32 0.0, %v1443
        %v1446 = vrot.slane %v341, 5
        %v1448 = vmul.f32 %v332, %v1446
        %v1450 = vrot.slane %v1448, 3
        %v1452 = vmul.f32 %v1444, %v1450
        %1453 = vst [vmem:[%s297] sm:$0x1] %v1452
        %s1454 = sand.u32 %s205, 1
        %s1455 = scalar_lea.sflag [#allocation4], %s1454
        %s1456 = sand.u32 %s205, 1
        %s1457 = scalar_lea.vmem [#allocation3], %s1456
        // Predicated region
        $region53: #{tpu_custom_call.1} parent=51 // pred_check
          %p1458 = pneg %p215
        $region54: #{tpu_custom_call.1} parent=51 // pred_check_branch
          %1460 = sbr.rel (%p1458) target = $region56
        $region55: #{tpu_custom_call.1} parent=51 // pred_region
          %s1462 = ssub.s32 16, 16
          %1463 = vsyncadd %s1455, %s1462
          %s1464 = smul.addr %s24, 16
          %s1465 = scalar_lea.hbm %s8, %s1464
          %s1467 = sshll.u32 %s1457, 4
          %s1468 = int_to_ptr.vmem [resolvable:$true] %s1467
          %1470 = dma.vmem_to_hbm [thread:$0]  %s1468, 16, %s1465, %s1455
        $region56: #{tpu_custom_call.1} parent=51 // pred_fallthru
          _
      $region52: #{tpu_custom_call.1} parent=5 // pred_fallthru
        _
      %p1471 = scmp.le.s32.totalorder 2, %s19
      // Predicated region
      $region57: #{tpu_custom_call.1} parent=5 // pred_check
        %p1472 = pneg %p1471
      $region58: #{tpu_custom_call.1} parent=5 // pred_check_branch
        %1474 = sbr.rel (%p1472) target = $region60
      $region59: #{tpu_custom_call.1} parent=5 // pred_region
        %s1475 = ssub.s32 %s19, 2
        // Predicated region
        $region61: #{tpu_custom_call.1} parent=59 // pred_check
          %p1476 = pneg %p221
        $region62: #{tpu_custom_call.1} parent=59 // pred_check_branch
          %1478 = sbr.rel (%p1476) target = $region64
        $region63: #{tpu_custom_call.1} parent=59 // pred_region
          %s1479 = sand.u32 %s206, 1
          %s1480 = scalar_lea.sflag [#allocation4], %s1479
          %s1481 = sand.u32 %s206, 1
          %s1482 = scalar_lea.vmem [#allocation3], %s1481
          %1483 = dma.done %s1480, 16
        $region64: #{tpu_custom_call.1} parent=59 // pred_fallthru
          _
      $region60: #{tpu_custom_call.1} parent=5 // pred_fallthru
        _
    $region6: #{tpu_custom_call.1} parent=1 // loop_footer
      %s23 = sadd.s32 1, %s19
    $region7: #{tpu_custom_call.1} parent=1 // loop_footer_branch
      %18 = sbr.rel target = $region3
    $region8: #{tpu_custom_call.1} parent=1 // loop_exit
      _
    %1484 = vsyncpa [#allocation4], 1
    %s1485 = scalar_lea.sflag [#allocation4], 1
    %1486 = vsyncpa %s1485, 1

</llo_original>
